<compile_context>
chip_gen: v7x
topology: tpu7x:2x2x1
jax: 0.10.0
libtpu: 0.0.40
codegen_flags: <defaults>
</compile_context>

<pallas_src>
import numpy as np
import jax
import jax.numpy as jnp
from jax.experimental import pallas as pl
from jax.experimental.pallas import tpu as pltpu

# MXU operand dtype. bf16 doubles MXU throughput on v5e/v6e/v7x; accumulation
# stays f32. Set to jnp.float32 for exact f32 convolutions.
_MXU_DTYPE = jnp.bfloat16
_SUBLANE = 8


def _round_up(x, m):
    return (x + m - 1) // m * m


def _pick_batch_block(n, hp, target_rows=256):
    """Largest divisor of n with b*hp <= target_rows (MXU M-fill), then backed
    off so the batch grid keeps >= 2 steps (feeds both TensorCores on v7x)."""
    ideal = max(1, target_rows // hp)
    b = max(d for d in range(1, n + 1) if n % d == 0 and d <= ideal)
    if n // b < 2 and n > 1:
        b = max(d for d in range(1, n) if n % d == 0 and n // d >= 2)
    return b


def _vmem_limit_bytes(b_blk, hp, h, w, cin, cmid, cout):
    """Explicit scoped-VMEM budget: double-buffered I/O blocks, grid-invariant
    weights, and an upper bound on the live f32/bf16 values in the body."""
    m = b_blk * hp
    f32, bf16 = 4, 2
    blocks = 2 * (m * w * cin * f32 + b_blk * h * w * cout * f32 + m * f32)
    weights = 2 * 3 * (w * cin * w * cmid + w * cmid * w * cout) * bf16
    weights += 2 * 3 * (w * cmid + w * cout) * f32
    live = m * (w * cin * bf16                               # xs
                + 4 * w * cmid * f32 + w * cmid * bf16       # layer-1 taps + y1 + ys
                + 4 * w * cout * f32)                        # layer-2 taps + y2
    est = blocks + weights + live
    # 2x headroom, floored at the common 32 MiB default scoped limit, capped
    # below v7x's 64 MiB physical VMEM.
    return int(min(64 * 2 ** 20, max(32 * 2 ** 20, 2 * est)))


# -----------------------------------------------------------------------------
# Kernel
# -----------------------------------------------------------------------------
def _make_fused_block_kernel(b_blk, hp, h):
    """Fused (Conv3x3+ReLU+BN) x 2 for a block of b_blk images.

    Ref layout:
      x_ref   : (B*Hp, W*Cin)  f32  per-image zero-halo slabs stacked on rows
      mask_ref: (B*Hp, 1)      f32  1.0 on interior rows (j in [1, H] per slab)
      wt*_ref : (3, K, N)      bf16 row-Toeplitz weights, one matrix per dy tap
      p*_ref  : (3, N)         f32  [bias; bn_scale; bn_shift], width-tiled
      o_ref   : (B*H, W*Cout)  f32  lane-dense output rows
    """

    def kernel(x_ref, mask_ref, wt1_ref, p1_ref, wt2_ref, p2_ref, o_ref):
        xs = x_ref[...].astype(wt1_ref.dtype)   # cast once; reused by all 3 taps
        mask = mask_ref[...]

        def taps(lhs, wt_ref):
            # 3 MXU matmuls, all with the SAME aligned whole-slab LHS.
            return [jnp.dot(lhs, wt_ref[dy], preferred_element_type=jnp.float32)
                    for dy in range(3)]

        def shift_down(t, k):
            # result[r] = t[r - k]; first k rows zero (they are halo rows).
            z = jnp.zeros((k, t.shape[1]), t.dtype)
            return jnp.concatenate([z, t[:-k, :]], axis=0)

        def shift_up(t, k):
            # result[r] = t[r + k]; last k rows zero (they are halo rows).
            z = jnp.zeros((k, t.shape[1]), t.dtype)
            return jnp.concatenate([t[k:, :], z], axis=0)

        def bias_relu_bn(acc, p_ref):
            # bias -> ReLU -> folded BatchNorm affine, all f32 on the VPU.
            return (jnp.maximum(acc + p_ref[0:1, :], 0.0) * p_ref[1:2, :]
                    + p_ref[2:3, :])

        # ---- layer 1: image row i lands on slab row i+1; masking the halo
        #      rows to zero realizes layer 2's height zero-padding. -----------
        t0, t1, t2 = taps(xs, wt1_ref)
        acc1 = shift_down(t0, 1) + t1 + shift_up(t2, 1)
        y1 = bias_relu_bn(acc1, p1_ref) * mask   # stays resident in VMEM
        ys = y1.astype(wt2_ref.dtype)            # single f32->bf16 cast

        # ---- layer 2: image row i lands on slab row i, so the per-image
        #      output extraction below is fully sublane-aligned. --------------
        q0, q1, q2 = taps(ys, wt2_ref)
        acc2 = q0 + shift_up(q1, 1) + shift_up(q2, 2)
        y2 = bias_relu_bn(acc2, p2_ref)

        for b in range(b_blk):                   # static unroll, aligned slices
            o_ref[b * h:(b + 1) * h, :] = (
                y2[b * hp:b * hp + h, :].astype(o_ref.dtype))

    return kernel


# -----------------------------------------------------------------------------
# Host-side weight/layout preparation
# -----------------------------------------------------------------------------
def _row_toeplitz(w_hwio, width):
    """Fold the kernel-width (dx) taps and the width-direction zero padding of
    a 3x3 'same' conv into banded matrices.

    w_hwio: (3, 3, Cin, Cout)  ->  (3, width*Cin, width*Cout) such that
        out_rows += x_rows_shifted_by(dy) @ result[dy]
    with rows flattened as (w, c).  Out-of-range w_in has no band entry, which
    implements the pad=1 zero padding along the width axis."""
    kh, kw, cin, cout = w_hwio.shape
    wt = jnp.zeros((kh, width, cin, width, cout), jnp.float32)
    for dx in range(kw):
        # band[w_in, w_out] = 1  iff  w_in == w_out + dx - 1
        band = jnp.eye(width, k=1 - dx, dtype=jnp.float32)
        wt = wt + band[None, :, None, :, None] * w_hwio[:, dx][:, None, :, None, :]
    return wt.reshape(kh, width * cin, width * cout)


def _tiled_affine(bias, scale, shift, width):
    """Stack [bias; scale; shift], each tiled across the width so they
    broadcast over the lane-dense (rows, W*C) layout."""
    return jnp.stack(
        [jnp.tile(bias, width), jnp.tile(scale, width), jnp.tile(shift, width)],
        axis=0,
    ).astype(jnp.float32)


# -----------------------------------------------------------------------------
# Public forward pass (matches UNetConvBlock(in, out, padding=True,
# batch_norm=True) in eval mode)
# -----------------------------------------------------------------------------
@jax.jit
def unet_conv_block(x_nchw, params):
    n, cin, h, w = x_nchw.shape
    cmid = params["w1"].shape[-1]
    cout = params["w2"].shape[-1]
    assert h % _SUBLANE == 0, "TODO(synk): generalize to H not multiple of 8"

    hp = _round_up(h + 2, _SUBLANE)      # per-image slab height (halos + align)
    b_blk = _pick_batch_block(n, hp)
    m = b_blk * hp

    # NCHW -> NHWC with the height zero-halo folded into the same copy, then
    # rows flattened as (N*Hp, W*Cin): channels ride the lane axis densely.
    x_nhwc = jnp.transpose(x_nchw, (0, 2, 3, 1))
    x_pad = jnp.pad(x_nhwc, ((0, 0), (1, hp - h - 1), (0, 0), (0, 0)))
    x_rows = x_pad.reshape(n * hp, w * cin)

    wt1 = _row_toeplitz(params["w1"], w).astype(_MXU_DTYPE)   # (3, W*Cin,  W*Cmid)
    wt2 = _row_toeplitz(params["w2"], w).astype(_MXU_DTYPE)   # (3, W*Cmid, W*Cout)
    p1 = _tiled_affine(params["b1"], params["s1"], params["sh1"], w)  # (3, W*Cmid)
    p2 = _tiled_affine(params["b2"], params["s2"], params["sh2"], w)  # (3, W*Cout)

    # Interior-row mask (1.0 on rows 1..H of every Hp slab); trace-time const.
    j = np.arange(m) % hp
    mask = jnp.asarray(((j >= 1) & (j <= h)).astype(np.float32)[:, None])

    kernel = _make_fused_block_kernel(b_blk, hp, h)

    out_rows = pl.pallas_call(
        kernel,
        out_shape=jax.ShapeDtypeStruct((n * h, w * cout), jnp.float32),
        grid=(n // b_blk,),
        in_specs=[
            pl.BlockSpec((m, w * cin), lambda i: (i, 0)),
            # The five inputs below are grid-invariant (constant index_map), so
            # Pallas only DMAs them once.  NOTE: for large W*C they should be
            # single-buffered (pipeline_mode=pl.Buffered(1)) to halve their
            # VMEM footprint; at this size the extra buffer is negligible.
            pl.BlockSpec((m, 1), lambda i: (0, 0)),
            pl.BlockSpec((3, w * cin, w * cmid), lambda i: (0, 0, 0)),
            pl.BlockSpec((3, w * cmid), lambda i: (0, 0)),
            pl.BlockSpec((3, w * cmid, w * cout), lambda i: (0, 0, 0)),
            pl.BlockSpec((3, w * cout), lambda i: (0, 0)),
        ],
        out_specs=pl.BlockSpec((b_blk * h, w * cout), lambda i: (i, 0)),
        compiler_params=pltpu.CompilerParams(
            dimension_semantics=("parallel",),  # batch blocks shard across v7x's 2 TCs
            vmem_limit_bytes=_vmem_limit_bytes(b_blk, hp, h, w, cin, cmid, cout),
        ),
    )(x_rows, mask, wt1, p1, wt2, p2)

    # (N*H, W*Cout) -> (N, H, W, Cout) -> NCHW.
    return jnp.transpose(out_rows.reshape(n, h, w, cout), (0, 3, 1, 2))


# -----------------------------------------------------------------------------
# Synthetic parameters (shapes match nn.Conv2d / nn.BatchNorm2d, eval mode)
# -----------------------------------------------------------------------------
def init_unet_conv_block_params(key, in_size, out_size):
    ks = jax.random.split(key, 12)
    eps = 1e-5

    def conv_params(kw_, kb_, cin, cout):
        fan_in = cin * 3 * 3
        bound = 1.0 / jnp.sqrt(fan_in)
        w = jax.random.uniform(kw_, (3, 3, cin, cout), jnp.float32, -bound, bound)
        b = jax.random.uniform(kb_, (cout,), jnp.float32, -bound, bound)
        return w, b

    def bn_params(kg, kb_, km, kv, c):
        gamma = 1.0 + 0.1 * jax.random.normal(kg, (c,), jnp.float32)
        beta = 0.1 * jax.random.normal(kb_, (c,), jnp.float32)
        mean = 0.1 * jax.random.normal(km, (c,), jnp.float32)
        var = jnp.abs(jax.random.normal(kv, (c,), jnp.float32)) + 0.5
        scale = gamma / jnp.sqrt(var + eps)
        shift = beta - mean * scale
        return scale, shift

    w1, b1 = conv_params(ks[0], ks[1], in_size, out_size)
    s1, sh1 = bn_params(ks[2], ks[3], ks[4], ks[5], out_size)
    w2, b2 = conv_params(ks[6], ks[7], out_size, out_size)
    s2, sh2 = bn_params(ks[8], ks[9], ks[10], ks[11], out_size)
    return dict(w1=w1, b1=b1, s1=s1, sh1=sh1, w2=w2, b2=b2, s2=s2, sh2=sh2)


# -----------------------------------------------------------------------------
# Pure-JAX reference (lax.conv). cast_dtype=bf16 reproduces the kernel's MXU
# operand rounding exactly; cast_dtype=None is the full-f32 reference.
# -----------------------------------------------------------------------------
def _reference(x_nchw, params, cast_dtype=None):
    def maybe_cast(a):
        return a.astype(cast_dtype) if cast_dtype is not None else a

    def layer(x, w, b, scale, shift):
        y = jax.lax.conv_general_dilated(
            maybe_cast(x), maybe_cast(w),
            window_strides=(1, 1), padding=[(1, 1), (1, 1)],
            dimension_numbers=("NCHW", "HWIO", "NCHW"),
            preferred_element_type=jnp.float32,
        )
        y = y + b[None, :, None, None]
        y = jnp.maximum(y, 0.0)
        return y * scale[None, :, None, None] + shift[None, :, None, None]

    y = layer(x_nchw, params["w1"], params["b1"], params["s1"], params["sh1"])
    y = layer(y, params["w2"], params["b2"], params["s2"], params["sh2"])
    return y


if __name__ == "__main__":
    key = jax.random.PRNGKey(0)
    k_x, k_p = jax.random.split(key)

    # Small shapes; batch=8 exercises batch-blocking (B_blk=4, grid=2 steps).
    N, C_in, H, W = 8, 4, 16, 16
    C_out = 8

    x = jax.random.normal(k_x, (N, C_in, H, W), jnp.float32)
    params = init_unet_conv_block_params(k_p, C_in, C_out)

    out = jax.block_until_ready(unet_conv_block(x, params))
    assert out.shape == (N, C_out, H, W), out.shape

    # Strict check vs a reference with identical bf16 operand rounding.
    ref_same_prec = _reference(x, params, cast_dtype=_MXU_DTYPE)
    assert jnp.allclose(out, ref_same_prec, atol=1e-3, rtol=1e-3), \
        "mismatch vs same-precision reference"

    # Sanity check vs the full-f32 reference (tolerance covers bf16 operands).
    ref_f32 = _reference(x, params, cast_dtype=None)
    assert jnp.allclose(out, ref_f32, atol=5e-2, rtol=5e-2), \
        "mismatch vs f32 reference"

    print("KERNEL_OK")
</pallas_src>

<mosaic_0001>
module attributes {stable_mosaic.version = 11 : i64} {
  func.func @kernel(%arg0: i32, %arg1: memref<96x64xf32, #tpu.memory_space<vmem>>, %arg2: memref<96x1xf32, #tpu.memory_space<vmem>>, %arg3: memref<3x64x128xbf16, #tpu.memory_space<vmem>>, %arg4: memref<3x128xf32, #tpu.memory_space<vmem>>, %arg5: memref<3x128x128xbf16, #tpu.memory_space<vmem>>, %arg6: memref<3x128xf32, #tpu.memory_space<vmem>>, %arg7: memref<64x128xf32, #tpu.memory_space<vmem>>) attributes {dimension_semantics = [#tpu.dimension_semantics<parallel>], iteration_bounds = array<i64: 2>, scalar_prefetch = 0 : i64, scratch_operands = 0 : i64, tpu.core_type = #tpu.core_type<tc>, window_params = [{transform_indices = @transform_0, window_bounds = array<i64: 96, 64>}, {pipeline_mode = #tpu.pipeline_mode<synchronous>, transform_indices = @transform_1, window_bounds = array<i64: 96, 1>}, {pipeline_mode = #tpu.pipeline_mode<synchronous>, transform_indices = @transform_2, window_bounds = array<i64: 3, 64, 128>}, {pipeline_mode = #tpu.pipeline_mode<synchronous>, transform_indices = @transform_3, window_bounds = array<i64: 3, 128>}, {pipeline_mode = #tpu.pipeline_mode<synchronous>, transform_indices = @transform_4, window_bounds = array<i64: 3, 128, 128>}, {pipeline_mode = #tpu.pipeline_mode<synchronous>, transform_indices = @transform_5, window_bounds = array<i64: 3, 128>}, {transform_indices = @transform_6, window_bounds = array<i64: 64, 128>}]} {
    %c0 = arith.constant 0 : index
    %c0_0 = arith.constant 0 : index
    %0 = vector.load %arg1[%c0, %c0_0] : memref<96x64xf32, #tpu.memory_space<vmem>>, vector<96x64xf32>
    %1 = arith.truncf %0 : vector<96x64xf32> to vector<96x64xbf16>
    %c0_1 = arith.constant 0 : index
    %c0_2 = arith.constant 0 : index
    %2 = vector.load %arg2[%c0_1, %c0_2] : memref<96x1xf32, #tpu.memory_space<vmem>>, vector<96x1xf32>
    %c0_3 = arith.constant 0 : index
    %c0_4 = arith.constant 0 : index
    %c0_5 = arith.constant 0 : index
    %3 = vector.load %arg3[%c0_3, %c0_4, %c0_5] : memref<3x64x128xbf16, #tpu.memory_space<vmem>>, vector<1x64x128xbf16>
    %4 = vector.shape_cast %3 : vector<1x64x128xbf16> to vector<64x128xbf16>
    %cst = arith.constant dense<0.000000e+00> : vector<96x128xf32>
    %5 = tpu.matmul %1, %4, %cst {dimension_numbers = #tpu.dot_dimension_numbers<[1], [0], [0], [1], [0, 0, 1, 1], [], []>} : vector<96x64xbf16>, vector<64x128xbf16>, vector<96x128xf32> -> vector<96x128xf32>
    %c1 = arith.constant 1 : index
    %c0_6 = arith.constant 0 : index
    %c0_7 = arith.constant 0 : index
    %6 = vector.load %arg3[%c1, %c0_6, %c0_7] : memref<3x64x128xbf16, #tpu.memory_space<vmem>>, vector<1x64x128xbf16>
    %7 = vector.shape_cast %6 : vector<1x64x128xbf16> to vector<64x128xbf16>
    %cst_8 = arith.constant dense<0.000000e+00> : vector<96x128xf32>
    %8 = tpu.matmul %1, %7, %cst_8 {dimension_numbers = #tpu.dot_dimension_numbers<[1], [0], [0], [1], [0, 0, 1, 1], [], []>} : vector<96x64xbf16>, vector<64x128xbf16>, vector<96x128xf32> -> vector<96x128xf32>
    %c2 = arith.constant 2 : index
    %c0_9 = arith.constant 0 : index
    %c0_10 = arith.constant 0 : index
    %9 = vector.load %arg3[%c2, %c0_9, %c0_10] : memref<3x64x128xbf16, #tpu.memory_space<vmem>>, vector<1x64x128xbf16>
    %10 = vector.shape_cast %9 : vector<1x64x128xbf16> to vector<64x128xbf16>
    %cst_11 = arith.constant dense<0.000000e+00> : vector<96x128xf32>
    %11 = tpu.matmul %1, %10, %cst_11 {dimension_numbers = #tpu.dot_dimension_numbers<[1], [0], [0], [1], [0, 0, 1, 1], [], []>} : vector<96x64xbf16>, vector<64x128xbf16>, vector<96x128xf32> -> vector<96x128xf32>
    %cst_12 = arith.constant 0.000000e+00 : f32
    %12 = vector.broadcast %cst_12 : f32 to vector<1x128xf32>
    %13 = vector.extract_strided_slice %5 {offsets = [0, 0], sizes = [95, 128], strides = [1, 1]} : vector<96x128xf32> to vector<95x128xf32>
    %14 = tpu.concatenate %12, %13 in 0 : vector<1x128xf32>, vector<95x128xf32> -> vector<96x128xf32>
    %15 = arith.addf %14, %8 : vector<96x128xf32>
    %cst_13 = arith.constant 0.000000e+00 : f32
    %16 = vector.broadcast %cst_13 : f32 to vector<1x128xf32>
    %17 = vector.extract_strided_slice %11 {offsets = [1, 0], sizes = [95, 128], strides = [1, 1]} : vector<96x128xf32> to vector<95x128xf32>
    %18 = tpu.concatenate %17, %16 in 0 : vector<95x128xf32>, vector<1x128xf32> -> vector<96x128xf32>
    %19 = arith.addf %15, %18 : vector<96x128xf32>
    %c0_14 = arith.constant 0 : index
    %c0_15 = arith.constant 0 : index
    %20 = vector.load %arg4[%c0_14, %c0_15] : memref<3x128xf32, #tpu.memory_space<vmem>>, vector<1x128xf32>
    %21 = vector.broadcast %20 : vector<1x128xf32> to vector<96x128xf32>
    %22 = arith.addf %19, %21 : vector<96x128xf32>
    %cst_16 = arith.constant 0.000000e+00 : f32
    %23 = vector.broadcast %cst_16 : f32 to vector<96x128xf32>
    %24 = arith.maximumf %22, %23 : vector<96x128xf32>
    %c1_17 = arith.constant 1 : index
    %c0_18 = arith.constant 0 : index
    %25 = vector.load %arg4[%c1_17, %c0_18] : memref<3x128xf32, #tpu.memory_space<vmem>>, vector<1x128xf32>
    %26 = vector.broadcast %25 : vector<1x128xf32> to vector<96x128xf32>
    %27 = arith.mulf %24, %26 : vector<96x128xf32>
    %c2_19 = arith.constant 2 : index
    %c0_20 = arith.constant 0 : index
    %28 = vector.load %arg4[%c2_19, %c0_20] : memref<3x128xf32, #tpu.memory_space<vmem>>, vector<1x128xf32>
    %29 = vector.broadcast %28 : vector<1x128xf32> to vector<96x128xf32>
    %30 = arith.addf %27, %29 : vector<96x128xf32>
    %31 = vector.broadcast %2 : vector<96x1xf32> to vector<96x128xf32>
    %32 = arith.mulf %30, %31 : vector<96x128xf32>
    %33 = arith.truncf %32 : vector<96x128xf32> to vector<96x128xbf16>
    %c0_21 = arith.constant 0 : index
    %c0_22 = arith.constant 0 : index
    %c0_23 = arith.constant 0 : index
    %34 = vector.load %arg5[%c0_21, %c0_22, %c0_23] : memref<3x128x128xbf16, #tpu.memory_space<vmem>>, vector<1x128x128xbf16>
    %35 = vector.shape_cast %34 : vector<1x128x128xbf16> to vector<128x128xbf16>
    %cst_24 = arith.constant dense<0.000000e+00> : vector<96x128xf32>
    %36 = tpu.matmul %33, %35, %cst_24 {dimension_numbers = #tpu.dot_dimension_numbers<[1], [0], [0], [1], [0, 0, 1, 1], [], []>} : vector<96x128xbf16>, vector<128x128xbf16>, vector<96x128xf32> -> vector<96x128xf32>
    %c1_25 = arith.constant 1 : index
    %c0_26 = arith.constant 0 : index
    %c0_27 = arith.constant 0 : index
    %37 = vector.load %arg5[%c1_25, %c0_26, %c0_27] : memref<3x128x128xbf16, #tpu.memory_space<vmem>>, vector<1x128x128xbf16>
    %38 = vector.shape_cast %37 : vector<1x128x128xbf16> to vector<128x128xbf16>
    %cst_28 = arith.constant dense<0.000000e+00> : vector<96x128xf32>
    %39 = tpu.matmul %33, %38, %cst_28 {dimension_numbers = #tpu.dot_dimension_numbers<[1], [0], [0], [1], [0, 0, 1, 1], [], []>} : vector<96x128xbf16>, vector<128x128xbf16>, vector<96x128xf32> -> vector<96x128xf32>
    %c2_29 = arith.constant 2 : index
    %c0_30 = arith.constant 0 : index
    %c0_31 = arith.constant 0 : index
    %40 = vector.load %arg5[%c2_29, %c0_30, %c0_31] : memref<3x128x128xbf16, #tpu.memory_space<vmem>>, vector<1x128x128xbf16>
    %41 = vector.shape_cast %40 : vector<1x128x128xbf16> to vector<128x128xbf16>
    %cst_32 = arith.constant dense<0.000000e+00> : vector<96x128xf32>
    %42 = tpu.matmul %33, %41, %cst_32 {dimension_numbers = #tpu.dot_dimension_numbers<[1], [0], [0], [1], [0, 0, 1, 1], [], []>} : vector<96x128xbf16>, vector<128x128xbf16>, vector<96x128xf32> -> vector<96x128xf32>
    %cst_33 = arith.constant 0.000000e+00 : f32
    %43 = vector.broadcast %cst_33 : f32 to vector<1x128xf32>
    %44 = vector.extract_strided_slice %39 {offsets = [1, 0], sizes = [95, 128], strides = [1, 1]} : vector<96x128xf32> to vector<95x128xf32>
    %45 = tpu.concatenate %44, %43 in 0 : vector<95x128xf32>, vector<1x128xf32> -> vector<96x128xf32>
    %46 = arith.addf %36, %45 : vector<96x128xf32>
    %cst_34 = arith.constant 0.000000e+00 : f32
    %47 = vector.broadcast %cst_34 : f32 to vector<2x128xf32>
    %48 = vector.extract_strided_slice %42 {offsets = [2, 0], sizes = [94, 128], strides = [1, 1]} : vector<96x128xf32> to vector<94x128xf32>
    %49 = tpu.concatenate %48, %47 in 0 : vector<94x128xf32>, vector<2x128xf32> -> vector<96x128xf32>
    %50 = arith.addf %46, %49 : vector<96x128xf32>
    %c0_35 = arith.constant 0 : index
    %c0_36 = arith.constant 0 : index
    %51 = vector.load %arg6[%c0_35, %c0_36] : memref<3x128xf32, #tpu.memory_space<vmem>>, vector<1x128xf32>
    %52 = vector.broadcast %51 : vector<1x128xf32> to vector<96x128xf32>
    %53 = arith.addf %50, %52 : vector<96x128xf32>
    %cst_37 = arith.constant 0.000000e+00 : f32
    %54 = vector.broadcast %cst_37 : f32 to vector<96x128xf32>
    %55 = arith.maximumf %53, %54 : vector<96x128xf32>
    %c1_38 = arith.constant 1 : index
    %c0_39 = arith.constant 0 : index
    %56 = vector.load %arg6[%c1_38, %c0_39] : memref<3x128xf32, #tpu.memory_space<vmem>>, vector<1x128xf32>
    %57 = vector.broadcast %56 : vector<1x128xf32> to vector<96x128xf32>
    %58 = arith.mulf %55, %57 : vector<96x128xf32>
    %c2_40 = arith.constant 2 : index
    %c0_41 = arith.constant 0 : index
    %59 = vector.load %arg6[%c2_40, %c0_41] : memref<3x128xf32, #tpu.memory_space<vmem>>, vector<1x128xf32>
    %60 = vector.broadcast %59 : vector<1x128xf32> to vector<96x128xf32>
    %61 = arith.addf %58, %60 : vector<96x128xf32>
    %62 = vector.extract_strided_slice %61 {offsets = [0, 0], sizes = [16, 128], strides = [1, 1]} : vector<96x128xf32> to vector<16x128xf32>
    %c0_42 = arith.constant 0 : index
    %c0_43 = arith.constant 0 : index
    %63 = vector.load %arg7[%c0_42, %c0_43] : memref<64x128xf32, #tpu.memory_space<vmem>>, vector<16x128xf32>
    tpu.vector_store %arg7[%c0_42, %c0_43], %62 {strides = array<i32>} : memref<64x128xf32, #tpu.memory_space<vmem>>, vector<16x128xf32>,
    %64 = vector.extract_strided_slice %61 {offsets = [24, 0], sizes = [16, 128], strides = [1, 1]} : vector<96x128xf32> to vector<16x128xf32>
    %c16 = arith.constant 16 : index
    %c0_44 = arith.constant 0 : index
    %65 = vector.load %arg7[%c16, %c0_44] : memref<64x128xf32, #tpu.memory_space<vmem>>, vector<16x128xf32>
    tpu.vector_store %arg7[%c16, %c0_44], %64 {strides = array<i32>} : memref<64x128xf32, #tpu.memory_space<vmem>>, vector<16x128xf32>,
    %66 = vector.extract_strided_slice %61 {offsets = [48, 0], sizes = [16, 128], strides = [1, 1]} : vector<96x128xf32> to vector<16x128xf32>
    %c32 = arith.constant 32 : index
    %c0_45 = arith.constant 0 : index
    %67 = vector.load %arg7[%c32, %c0_45] : memref<64x128xf32, #tpu.memory_space<vmem>>, vector<16x128xf32>
    tpu.vector_store %arg7[%c32, %c0_45], %66 {strides = array<i32>} : memref<64x128xf32, #tpu.memory_space<vmem>>, vector<16x128xf32>,
    %68 = vector.extract_strided_slice %61 {offsets = [72, 0], sizes = [16, 128], strides = [1, 1]} : vector<96x128xf32> to vector<16x128xf32>
    %c48 = arith.constant 48 : index
    %c0_46 = arith.constant 0 : index
    %69 = vector.load %arg7[%c48, %c0_46] : memref<64x128xf32, #tpu.memory_space<vmem>>, vector<16x128xf32>
    tpu.vector_store %arg7[%c48, %c0_46], %68 {strides = array<i32>} : memref<64x128xf32, #tpu.memory_space<vmem>>, vector<16x128xf32>,
    return
  }
  func.func @transform_0(%arg0: i32) -> (i32, i32) {
    %c0_i32 = arith.constant 0 : i32
    %c0_i32_0 = arith.constant 0 : i32
    return %arg0, %c0_i32 : i32, i32
  }
  func.func @transform_1(%arg0: i32) -> (i32, i32) {
    %c0_i32 = arith.constant 0 : i32
    %c0_i32_0 = arith.constant 0 : i32
    %c0_i32_1 = arith.constant 0 : i32
    return %c0_i32, %c0_i32_0 : i32, i32
  }
  func.func @transform_2(%arg0: i32) -> (i32, i32, i32) {
    %c0_i32 = arith.constant 0 : i32
    %c0_i32_0 = arith.constant 0 : i32
    %c0_i32_1 = arith.constant 0 : i32
    %c0_i32_2 = arith.constant 0 : i32
    return %c0_i32, %c0_i32_0, %c0_i32_1 : i32, i32, i32
  }
  func.func @transform_3(%arg0: i32) -> (i32, i32) {
    %c0_i32 = arith.constant 0 : i32
    %c0_i32_0 = arith.constant 0 : i32
    %c0_i32_1 = arith.constant 0 : i32
    return %c0_i32, %c0_i32_0 : i32, i32
  }
  func.func @transform_4(%arg0: i32) -> (i32, i32, i32) {
    %c0_i32 = arith.constant 0 : i32
    %c0_i32_0 = arith.constant 0 : i32
    %c0_i32_1 = arith.constant 0 : i32
    %c0_i32_2 = arith.constant 0 : i32
    return %c0_i32, %c0_i32_0, %c0_i32_1 : i32, i32, i32
  }
  func.func @transform_5(%arg0: i32) -> (i32, i32) {
    %c0_i32 = arith.constant 0 : i32
    %c0_i32_0 = arith.constant 0 : i32
    %c0_i32_1 = arith.constant 0 : i32
    return %c0_i32, %c0_i32_0 : i32, i32
  }
  func.func @transform_6(%arg0: i32) -> (i32, i32) {
    %c0_i32 = arith.constant 0 : i32
    %c0_i32_0 = arith.constant 0 : i32
    return %arg0, %c0_i32 : i32, i32
  }
}

</mosaic_0001>

<llo_original>
// kernel: tile.33
$region0: #{tile.33}
  #allocation0 [shape = 's32[1]{0}', space=sflag, size = 0x4, scoped, tag = 'scoped memory for tile.33']
  %s0 = inlined_call_operand.vmem [shape: f32[8], index: 0, kind: input, shape index: {}]
  %s1 = inlined_call_operand.vmem [shape: f32[16,8], index: 1, kind: output, shape index: {}]
  // Predicated region
  $region2: #{tile.33} parent=0 // pred_check
    _
  $region3: #{tile.33} parent=0 // pred_check_branch
    %3 = sbr.rel (0) target = $region5
  $region4: #{tile.33} parent=0 // pred_region
    _
  $region5: #{tile.33} parent=0 // pred_fallthru
    _
  %v4 = vld [vmem:[%s0] ss:$0 sm:$0xff]
  %5 = vst [vmem:[%s1] sm:$0xff] %v4
  %s6 = scalar_lea.vmem %s1, 8
  %7 = vst [vmem:[%s6] sm:$0xff] %v4

// kernel: tile.42
$region0: #{tile.42}
  %s0 = inlined_call_operand.vmem [shape: f32[16,8], index: 0, kind: input, shape index: {}]
  %s1 = inlined_call_operand.vmem [shape: f32[1,128], index: 1, kind: output, shape index: {}]
  $region1: #{tile.42} parent=0
    #allocation0 [shape = 'u8[4096]{0}', space=vmem, size = 0x1000, scoped, tag = 'scoped mem for output reshape']
    %v2 = vld [vmem:[%s0] sm:$0x1]
    %vm3 = vcmask 64512
    %4 = vst.msk [vmem:[#allocation0] sm:$0x1] %vm3, %v2
    %s5 = scalar_lea.vmem %s0, 15
    %v6 = vld [vmem:[%s5] sm:$0x1]
    %7 = vrot.lane.b32.xlu0 %v6, 120
    %v8 = vpop.permute.xlu0 %7
    %vm9 = vcmask 1048512
    %10 = vst.msk [vmem:[#allocation0] sm:$0x1] %vm9, %v8
    %s11 = scalar_lea.vmem %s0, 14
    %v12 = vld [vmem:[%s11] sm:$0x1]
    %13 = vrot.lane.b32.xlu0 %v12, 112
    %v14 = vpop.permute.xlu0 %13
    %vm15 = vcmask 982912
    %16 = vst.msk [vmem:[#allocation0] sm:$0x1] %vm15, %v14
    %s17 = scalar_lea.vmem %s0, 13
    %v18 = vld [vmem:[%s17] sm:$0x1]
    %19 = vrot.lane.b32.xlu0 %v18, 104
    %v20 = vpop.permute.xlu0 %19
    %vm21 = vcmask 917312
    %22 = vst.msk [vmem:[#allocation0] sm:$0x1] %vm21, %v20
    %s23 = scalar_lea.vmem %s0, 12
    %v24 = vld [vmem:[%s23] sm:$0x1]
    %25 = vrot.lane.b32.xlu0 %v24, 96
    %v26 = vpop.permute.xlu0 %25
    %vm27 = vcmask 851712
    %28 = vst.msk [vmem:[#allocation0] sm:$0x1] %vm27, %v26
    %s29 = scalar_lea.vmem %s0, 11
    %v30 = vld [vmem:[%s29] sm:$0x1]
    %31 = vrot.lane.b32.xlu0 %v30, 88
    %v32 = vpop.permute.xlu0 %31
    %vm33 = vcmask 786112
    %34 = vst.msk [vmem:[#allocation0] sm:$0x1] %vm33, %v32
    %s35 = scalar_lea.vmem %s0, 10
    %v36 = vld [vmem:[%s35] sm:$0x1]
    %37 = vrot.lane.b32.xlu0 %v36, 80
    %v38 = vpop.permute.xlu0 %37
    %vm39 = vcmask 720512
    %40 = vst.msk [vmem:[#allocation0] sm:$0x1] %vm39, %v38
    %s41 = scalar_lea.vmem %s0, 9
    %v42 = vld [vmem:[%s41] sm:$0x1]
    %43 = vrot.lane.b32.xlu0 %v42, 72
    %v44 = vpop.permute.xlu0 %43
    %vm45 = vcmask 654912
    %46 = vst.msk [vmem:[#allocation0] sm:$0x1] %vm45, %v44
    %s47 = scalar_lea.vmem %s0, 8
    %v48 = vld [vmem:[%s47] sm:$0x1]
    %49 = vrot.lane.b32.xlu0 %v48, 64
    %v50 = vpop.permute.xlu0 %49
    %vm51 = vcmask 589312
    %52 = vst.msk [vmem:[#allocation0] sm:$0x1] %vm51, %v50
    %s53 = scalar_lea.vmem %s0, 7
    %v54 = vld [vmem:[%s53] sm:$0x1]
    %55 = vrot.lane.b32.xlu0 %v54, 56
    %v56 = vpop.permute.xlu0 %55
    %vm57 = vcmask 523712
    %58 = vst.msk [vmem:[#allocation0] sm:$0x1] %vm57, %v56
    %s59 = scalar_lea.vmem %s0, 6
    %v60 = vld [vmem:[%s59] sm:$0x1]
    %61 = vrot.lane.b32.xlu0 %v60, 48
    %v62 = vpop.permute.xlu0 %61
    %vm63 = vcmask 458112
    %64 = vst.msk [vmem:[#allocation0] sm:$0x1] %vm63, %v62
    %s65 = scalar_lea.vmem %s0, 5
    %v66 = vld [vmem:[%s65] sm:$0x1]
    %67 = vrot.lane.b32.xlu0 %v66, 40
    %v68 = vpop.permute.xlu0 %67
    %vm69 = vcmask 392512
    %70 = vst.msk [vmem:[#allocation0] sm:$0x1] %vm69, %v68
    %s71 = scalar_lea.vmem %s0, 4
    %v72 = vld [vmem:[%s71] sm:$0x1]
    %73 = vrot.lane.b32.xlu0 %v72, 32
    %v74 = vpop.permute.xlu0 %73
    %vm75 = vcmask 326912
    %76 = vst.msk [vmem:[#allocation0] sm:$0x1] %vm75, %v74
    %s77 = scalar_lea.vmem %s0, 3
    %v78 = vld [vmem:[%s77] sm:$0x1]
    %79 = vrot.lane.b32.xlu0 %v78, 24
    %v80 = vpop.permute.xlu0 %79
    %vm81 = vcmask 261312
    %82 = vst.msk [vmem:[#allocation0] sm:$0x1] %vm81, %v80
    %s83 = scalar_lea.vmem %s0, 2
    %v84 = vld [vmem:[%s83] sm:$0x1]
    %85 = vrot.lane.b32.xlu0 %v84, 16
    %v86 = vpop.permute.xlu0 %85
    %vm87 = vcmask 195712
    %88 = vst.msk [vmem:[#allocation0] sm:$0x1] %vm87, %v86
    %s89 = scalar_lea.vmem %s0, 1
    %v90 = vld [vmem:[%s89] sm:$0x1]
    %91 = vrot.lane.b32.xlu0 %v90, 8
    %v92 = vpop.permute.xlu0 %91
    %vm93 = vcmask 130112
    %94 = vst.msk [vmem:[#allocation0] sm:$0x1] %vm93, %v92
    %s96 = sshllo.u32 0, 1
    %v98 = vld [vmem:[#allocation0] sm:%s96]
    %s99 = sshllo.u32 0, 1
    %100 = vst [vmem:[%s1] sm:%s99] %v98

// kernel: unet_conv_block.1
$region0: #{unet_conv_block.1}
  #allocation0 [shape = 'u32[]', space=smem, size = 0x4, offset = 0x4, fixed_abs, tag = 'smem constant byte address 0x4 - core index']
  #allocation1 [shape = 'u32[144,128]{1,0:T(1,128)}', space=vmem, size = 0x12000, scoped, tag = 'internal scratch']
  %s0 = inlined_call_operand.vmem [shape: f32[192,64], index: 0, kind: input, shape index: {}]
  %s1 = inlined_call_operand.vmem [shape: f32[96,1], index: 1, kind: input, shape index: {}]
  %s2 = inlined_call_operand.vmem [shape: bf16[3,64,128], index: 2, kind: input, shape index: {}]
  %s3 = inlined_call_operand.vmem [shape: f32[3,128], index: 3, kind: input, shape index: {}]
  %s4 = inlined_call_operand.vmem [shape: bf16[3,128,128], index: 4, kind: input, shape index: {}]
  %s5 = inlined_call_operand.vmem [shape: f32[3,128], index: 5, kind: input, shape index: {}]
  %s6 = inlined_call_operand.vmem [shape: f32[128,128], index: 6, kind: output, shape index: {}]
  %s7 = sld [smem:[#allocation0]]
  $region57: #{unet_conv_block.1} parent=0
    _
  %s9 = ssub.s32 1, %s7
  %s10 = scalar_select 0, %s9, %s7
  loop: start=0, step=1, limit=4
  $region2: #{unet_conv_block.1} parent=0 // loop_pre_header
    _
  $region3: #{unet_conv_block.1} parent=0 // loop_header
    %s12 = sphi 0, %s16
    %p13 = scmp.ge.s32.totalorder %s12, 4
    %s22 = sphi 0, %s24
    %s25 = sphi 0, %s22
    %s26 = sphi 0, %s25
    %s42 = sphi 0, %s26
    %s46 = sphi 0, %s46
    %s48 = sphi 0, %s46
    %s49 = sphi 0, %s48
    %s63 = sphi 0, %s49
    %s67 = sphi 0, %s67
    %s69 = sphi 0, %s67
    %s70 = sphi 0, %s69
    %s84 = sphi 0, %s70
    %s88 = sphi 0, %s88
    %s90 = sphi 0, %s88
    %s91 = sphi 0, %s90
    %s105 = sphi 0, %s91
    %s109 = sphi 0, %s109
    %s111 = sphi 0, %s109
    %s112 = sphi 0, %s111
    %s126 = sphi 0, %s112
    %s130 = sphi 0, %s130
    %s132 = sphi 0, %s130
    %s133 = sphi 0, %s132
    %s147 = sphi 0, %s133
    %s153 = sphi 0, %s155
    %s156 = sphi 0, %s153
    %s157 = sphi 0, %s156
    %s173 = sphi 0, %s157
  $region4: #{unet_conv_block.1} parent=0 // loop_header_branch
    %15 = sbr.rel (%p13) target = $region8
  $region5: #{unet_conv_block.1} parent=0 // loop_body
    %s17 = ssub.s32 %s12, 1
    %s18 = ssub.s32 %s12, 2
    %s19 = sadd.s32 %s12, 1
    %s20 = ssub.s32 %s12, %s19
    %p21 = scmp.eq.s32.totalorder %s20, 0
    %s23 = sadd.s32 %s22, 1
    %s24 = scalar_select %p21, %s22, %s23
    %p27 = pneg %p21
    %p28 = scmp.eq.s32.totalorder %s12, 1
    %p29 = por %p27, %p28
    %p30 = scmp.ne.s32.totalorder %s22, %s25
    %p31 = scmp.eq.s32.totalorder %s12, 0
    %p32 = por %p30, %p31
    %p33 = scmp.ne.s32.totalorder %s22, %s25
    %p34 = scmp.eq.s32.totalorder %s17, 1
    %p35 = por %p33, %p34
    %p36 = scmp.ne.s32.totalorder %s25, %s26
    %p37 = scmp.eq.s32.totalorder %s17, 0
    %p38 = por %p36, %p37
    %p39 = scmp.ne.s32.totalorder %s25, %s26
    %p40 = scmp.eq.s32.totalorder %s18, 1
    %p41 = por %p39, %p40
    %p43 = scmp.ne.s32.totalorder %s26, %s42
    %p44 = scmp.eq.s32.totalorder %s18, 0
    %p45 = por %p43, %p44
    %s47 = sadd.s32 %s46, 1
    %p50 = scmp.eq.s32.totalorder %s12, 1
    %p51 = scmp.ne.s32.totalorder %s46, %s48
    %p52 = scmp.eq.s32.totalorder %s12, 0
    %p53 = por %p51, %p52
    %p54 = scmp.ne.s32.totalorder %s46, %s48
    %p55 = scmp.eq.s32.totalorder %s17, 1
    %p56 = por %p54, %p55
    %p57 = scmp.ne.s32.totalorder %s48, %s49
    %p58 = scmp.eq.s32.totalorder %s17, 0
    %p59 = por %p57, %p58
    %p60 = scmp.ne.s32.totalorder %s48, %s49
    %p61 = scmp.eq.s32.totalorder %s18, 1
    %p62 = por %p60, %p61
    %p64 = scmp.ne.s32.totalorder %s49, %s63
    %p65 = scmp.eq.s32.totalorder %s18, 0
    %p66 = por %p64, %p65
    %s68 = sadd.s32 %s67, 1
    %p71 = scmp.eq.s32.totalorder %s12, 1
    %p72 = scmp.ne.s32.totalorder %s67, %s69
    %p73 = scmp.eq.s32.totalorder %s12, 0
    %p74 = por %p72, %p73
    %p75 = scmp.ne.s32.totalorder %s67, %s69
    %p76 = scmp.eq.s32.totalorder %s17, 1
    %p77 = por %p75, %p76
    %p78 = scmp.ne.s32.totalorder %s69, %s70
    %p79 = scmp.eq.s32.totalorder %s17, 0
    %p80 = por %p78, %p79
    %p81 = scmp.ne.s32.totalorder %s69, %s70
    %p82 = scmp.eq.s32.totalorder %s18, 1
    %p83 = por %p81, %p82
    %p85 = scmp.ne.s32.totalorder %s70, %s84
    %p86 = scmp.eq.s32.totalorder %s18, 0
    %p87 = por %p85, %p86
    %s89 = sadd.s32 %s88, 1
    %p92 = scmp.eq.s32.totalorder %s12, 1
    %p93 = scmp.ne.s32.totalorder %s88, %s90
    %p94 = scmp.eq.s32.totalorder %s12, 0
    %p95 = por %p93, %p94
    %p96 = scmp.ne.s32.totalorder %s88, %s90
    %p97 = scmp.eq.s32.totalorder %s17, 1
    %p98 = por %p96, %p97
    %p99 = scmp.ne.s32.totalorder %s90, %s91
    %p100 = scmp.eq.s32.totalorder %s17, 0
    %p101 = por %p99, %p100
    %p102 = scmp.ne.s32.totalorder %s90, %s91
    %p103 = scmp.eq.s32.totalorder %s18, 1
    %p104 = por %p102, %p103
    %p106 = scmp.ne.s32.totalorder %s91, %s105
    %p107 = scmp.eq.s32.totalorder %s18, 0
    %p108 = por %p106, %p107
    %s110 = sadd.s32 %s109, 1
    %p113 = scmp.eq.s32.totalorder %s12, 1
    %p114 = scmp.ne.s32.totalorder %s109, %s111
    %p115 = scmp.eq.s32.totalorder %s12, 0
    %p116 = por %p114, %p115
    %p117 = scmp.ne.s32.totalorder %s109, %s111
    %p118 = scmp.eq.s32.totalorder %s17, 1
    %p119 = por %p117, %p118
    %p120 = scmp.ne.s32.totalorder %s111, %s112
    %p121 = scmp.eq.s32.totalorder %s17, 0
    %p122 = por %p120, %p121
    %p123 = scmp.ne.s32.totalorder %s111, %s112
    %p124 = scmp.eq.s32.totalorder %s18, 1
    %p125 = por %p123, %p124
    %p127 = scmp.ne.s32.totalorder %s112, %s126
    %p128 = scmp.eq.s32.totalorder %s18, 0
    %p129 = por %p127, %p128
    %s131 = sadd.s32 %s130, 1
    %p134 = scmp.eq.s32.totalorder %s12, 1
    %p135 = scmp.ne.s32.totalorder %s130, %s132
    %p136 = scmp.eq.s32.totalorder %s12, 0
    %p137 = por %p135, %p136
    %p138 = scmp.ne.s32.totalorder %s130, %s132
    %p139 = scmp.eq.s32.totalorder %s17, 1
    %p140 = por %p138, %p139
    %p141 = scmp.ne.s32.totalorder %s132, %s133
    %p142 = scmp.eq.s32.totalorder %s17, 0
    %p143 = por %p141, %p142
    %p144 = scmp.ne.s32.totalorder %s132, %s133
    %p145 = scmp.eq.s32.totalorder %s18, 1
    %p146 = por %p144, %p145
    %p148 = scmp.ne.s32.totalorder %s133, %s147
    %p149 = scmp.eq.s32.totalorder %s18, 0
    %p150 = por %p148, %p149
    %s151 = ssub.s32 %s12, %s19
    %p152 = scmp.eq.s32.totalorder %s151, 0
    %s154 = sadd.s32 %s153, 1
    %s155 = scalar_select %p152, %s153, %s154
    %p158 = pneg %p152
    %p159 = scmp.eq.s32.totalorder %s12, 1
    %p160 = por %p158, %p159
    %p161 = scmp.ne.s32.totalorder %s153, %s156
    %p162 = scmp.eq.s32.totalorder %s12, 0
    %p163 = por %p161, %p162
    %p164 = scmp.ne.s32.totalorder %s153, %s156
    %p165 = scmp.eq.s32.totalorder %s17, 1
    %p166 = por %p164, %p165
    %p167 = scmp.ne.s32.totalorder %s156, %s157
    %p168 = scmp.eq.s32.totalorder %s17, 0
    %p169 = por %p167, %p168
    %p170 = scmp.ne.s32.totalorder %s156, %s157
    %p171 = scmp.eq.s32.totalorder %s18, 1
    %p172 = por %p170, %p171
    %p174 = scmp.ne.s32.totalorder %s157, %s173
    %p175 = scmp.eq.s32.totalorder %s18, 0
    %p176 = por %p174, %p175
    %p177 = scmp.le.s32.totalorder 1, %s12
    %p178 = scmp.lt.s32.totalorder %s12, 3
    %p179 = pnand %p177, %p178
    %p180 = pneg %p179
    // Predicated region
    $region9: #{unet_conv_block.1} parent=5 // pred_check
      _
    $region10: #{unet_conv_block.1} parent=5 // pred_check_branch
      %182 = sbr.rel (%p179) target = $region12
    $region11: #{unet_conv_block.1} parent=5 // pred_region
      %s183 = ssub.s32 %s12, 1
      // Predicated region
      $region13: #{unet_conv_block.1} parent=11 // pred_check
        %p184 = pneg %p59
      $region14: #{unet_conv_block.1} parent=11 // pred_check_branch
        %186 = sbr.rel (%p184) target = $region16
      $region15: #{unet_conv_block.1} parent=11 // pred_region
        _
      $region16: #{unet_conv_block.1} parent=11 // pred_fallthru
        _
      // Predicated region
      $region17: #{unet_conv_block.1} parent=11 // pred_check
        %p187 = pneg %p80
      $region18: #{unet_conv_block.1} parent=11 // pred_check_branch
        %189 = sbr.rel (%p187) target = $region20
      $region19: #{unet_conv_block.1} parent=11 // pred_region
        _
      $region20: #{unet_conv_block.1} parent=11 // pred_fallthru
        _
      // Predicated region
      $region21: #{unet_conv_block.1} parent=11 // pred_check
        %p190 = pneg %p101
      $region22: #{unet_conv_block.1} parent=11 // pred_check_branch
        %192 = sbr.rel (%p190) target = $region24
      $region23: #{unet_conv_block.1} parent=11 // pred_region
        _
      $region24: #{unet_conv_block.1} parent=11 // pred_fallthru
        _
      // Predicated region
      $region25: #{unet_conv_block.1} parent=11 // pred_check
        %p193 = pneg %p122
      $region26: #{unet_conv_block.1} parent=11 // pred_check_branch
        %195 = sbr.rel (%p193) target = $region28
      $region27: #{unet_conv_block.1} parent=11 // pred_region
        _
      $region28: #{unet_conv_block.1} parent=11 // pred_fallthru
        _
      // Predicated region
      $region29: #{unet_conv_block.1} parent=11 // pred_check
        %p196 = pneg %p143
      $region30: #{unet_conv_block.1} parent=11 // pred_check_branch
        %198 = sbr.rel (%p196) target = $region32
      $region31: #{unet_conv_block.1} parent=11 // pred_region
        _
      $region32: #{unet_conv_block.1} parent=11 // pred_fallthru
        _
    $region12: #{unet_conv_block.1} parent=5 // pred_fallthru
      _
    %p199 = scmp.lt.s32.totalorder %s12, 2
    // Predicated region
    $region33: #{unet_conv_block.1} parent=5 // pred_check
      %p200 = pneg %p199
    $region34: #{unet_conv_block.1} parent=5 // pred_check_branch
      %202 = sbr.rel (%p200) target = $region36
    $region35: #{unet_conv_block.1} parent=5 // pred_region
      // Predicated region
      $region37: #{unet_conv_block.1} parent=35 // pred_check
        %p203 = pneg %p32
      $region38: #{unet_conv_block.1} parent=35 // pred_check_branch
        %205 = sbr.rel (%p203) target = $region40
      $region39: #{unet_conv_block.1} parent=35 // pred_region
        %s206 = smul.u32 12, %s12
        %p207 = scmp.lt.s32.totalorder %s206, 23
        %s208 = scalar_select %p207, %s206, 23
        %s209 = smul.addr %s208, 8
        %s210 = scalar_lea.vmem %s0, %s209
        %s211 = smul.u32 12, %s12
      $region40: #{unet_conv_block.1} parent=35 // pred_fallthru
        _
    $region36: #{unet_conv_block.1} parent=5 // pred_fallthru
      _
    %p212 = scmp.le.s32.totalorder 1, %s12
    %p213 = scmp.lt.s32.totalorder %s12, 3
    %p214 = pnand %p212, %p213
    %p215 = pneg %p214
    // Predicated region
    $region41: #{unet_conv_block.1} parent=5 // pred_check
      _
    $region42: #{unet_conv_block.1} parent=5 // pred_check_branch
      %217 = sbr.rel (%p214) target = $region44
    $region43: #{unet_conv_block.1} parent=5 // pred_region
      %s218 = ssub.s32 %s12, 1
      %s219 = smul.u32 12, %s17
      %p220 = scmp.lt.s32.totalorder %s219, 23
      %s221 = scalar_select %p220, %s219, 23
      %s222 = smul.addr %s221, 8
      %s223 = scalar_lea.vmem %s0, %s222
      %p224 = pneg %p38
      %p225 = pneg %p35
      %p226 = pneg %p59
      %p227 = pneg %p56
      %p228 = pneg %p80
      %p229 = pneg %p77
      %p230 = pneg %p101
      %p231 = pneg %p98
      %p232 = pneg %p122
      %p233 = pneg %p119
      %p234 = pneg %p143
      %p235 = pneg %p140
      %p236 = pneg %p169
      %p237 = pneg %p166
      %s238 = smul.u32 8, %s17
      %p239 = scmp.lt.s32.totalorder %s238, 15
      %s240 = scalar_select %p239, %s238, 15
      %s241 = smul.addr %s240, 8
      %s242 = scalar_lea.vmem %s6, %s241
      %s243 = smul.u32 12, %s17
      %p244 = scmp.lt.s32.totalorder %s243, 23
      %s245 = scalar_select %p244, %s243, 23
      %s246 = smul.addr %s245, 8
      %s247 = scalar_lea.vmem %s0, %s246
      %s248 = smul.u32 12, %s17
      %s249 = smul.u32 8, %s17
      %p250 = scmp.lt.s32.totalorder %s249, 15
      %s251 = scalar_select %p250, %s249, 15
      %s252 = smul.addr %s251, 8
      %s253 = scalar_lea.vmem %s6, %s252
      %s254 = smul.u32 8, %s17
      %v256 = vld [vmem:[%s247] sm:$0xff]
      %v257 = vld [vmem:[%s247 + $0x8] sm:$0xff]
      %v258 = vld [vmem:[%s247 + $0x10] sm:$0xff]
      %v259 = vld [vmem:[%s247 + $0x18] sm:$0xff]
      %v260 = vld [vmem:[%s247 + $0x20] sm:$0xff]
      %v261 = vld [vmem:[%s247 + $0x28] sm:$0xff]
      %v262 = vld [vmem:[%s247 + $0x30] sm:$0xff]
      %v263 = vld [vmem:[%s247 + $0x38] sm:$0xff]
      %v264 = vld [vmem:[%s247 + $0x40] sm:$0xff]
      %v265 = vld [vmem:[%s247 + $0x48] sm:$0xff]
      %v266 = vld [vmem:[%s247 + $0x50] sm:$0xff]
      %v267 = vld [vmem:[%s247 + $0x58] sm:$0xff]
      %v268 = vpack.c.bf16 %v257, %v256
      %v269 = vpack.c.bf16 %v259, %v258
      %v270 = vpack.c.bf16 %v261, %v260
      %v271 = vpack.c.bf16 %v263, %v262
      %v272 = vpack.c.bf16 %v265, %v264
      %v273 = vpack.c.bf16 %v267, %v266
      %v274 = vld [vmem:[%s1] sm:$0xff]
      %v275 = vld [vmem:[%s1 + $0x8] sm:$0xff]
      %v276 = vld [vmem:[%s1 + $0x10] sm:$0xff]
      %v277 = vld [vmem:[%s1 + $0x18] sm:$0xff]
      %v278 = vld [vmem:[%s1 + $0x20] sm:$0xff]
      %v279 = vld [vmem:[%s1 + $0x28] sm:$0xff]
      %v280 = vld [vmem:[%s1 + $0x30] sm:$0xff]
      %v281 = vld [vmem:[%s1 + $0x38] sm:$0xff]
      %v282 = vld [vmem:[%s1 + $0x40] sm:$0xff]
      %v283 = vld [vmem:[%s1 + $0x48] sm:$0xff]
      %v284 = vld [vmem:[%s1 + $0x50] sm:$0xff]
      %v285 = vld [vmem:[%s1 + $0x58] sm:$0xff]
      %v286 = vld [vmem:[%s2] sm:$0xf]
      %v287 = vld [vmem:[%s2 + $0x4] sm:$0xf]
      %v288 = vld [vmem:[%s2 + $0x8] sm:$0xf]
      %v289 = vld [vmem:[%s2 + $0xc] sm:$0xf]
      %v290 = vld [vmem:[%s2 + $0x10] sm:$0xf]
      %v291 = vld [vmem:[%s2 + $0x14] sm:$0xf]
      %v292 = vld [vmem:[%s2 + $0x18] sm:$0xf]
      %v293 = vld [vmem:[%s2 + $0x1c] sm:$0xf]
      %v302 = vunpack.c.l.b16 %v286
      %v303 = vunpack.c.l.b16 %v287
      %v304 = vunpack.c.l.b16 %v288
      %v305 = vunpack.c.l.b16 %v289
      %v306 = vunpack.c.l.b16 %v290
      %v307 = vunpack.c.l.b16 %v291
      %v308 = vunpack.c.l.b16 %v292
      %v309 = vunpack.c.l.b16 %v293
      %v310 = vpack.c.b16 %v303, %v302
      %v311 = vpack.c.b16 %v305, %v304
      %v312 = vpack.c.b16 %v307, %v306
      %v313 = vpack.c.b16 %v309, %v308
      %vm318 = vcmask 523264
      %v320 = vsel %vm318, %v268, 0
      %v323 = vsel %vm318, %v269, 0
      %v326 = vsel %vm318, %v270, 0
      %v329 = vsel %vm318, %v271, 0
      %v332 = vsel %vm318, %v272, 0
      %v335 = vsel %vm318, %v273, 0
      %337 = vmatprep.subr.bf16.mxu0 0
      %338 = vmatpush1.bf16.msra.mxu0 %v310
      %339 = vmatprep.subr.bf16.mxu0 0
      %340 = vmatpush1.bf16.msra.mxu0 %v311
      %341 = vmatprep.subr.bf16.mxu0 0
      %342 = vmatpush1.bf16.msra.mxu0 %v312
      %343 = vmatprep.subr.bf16.mxu0 0
      %344 = vmatpush1.bf16.msra.mxu0 %v313
      %345 = vmatprep.subr.bf16.mxu0 0
      %346 = vmatpush1.bf16.msra.mxu0 0
      %347 = vmatprep.subr.bf16.mxu0 0
      %348 = vmatpush1.bf16.msra.mxu0 0
      %349 = vmatprep.subr.bf16.mxu0 0
      %350 = vmatpush1.bf16.msra.mxu0 0
      %351 = vmatprep.subr.bf16.mxu0 0
      %352 = vmatpush1.bf16.msra.mxu0 0
      %353 = vmatprep.subr.bf16.mxu0 0
      %354 = vmatpush1.bf16.msra.mxu0 0
      %355 = vmatprep.subr.bf16.mxu0 0
      %356 = vmatpush1.bf16.msra.mxu0 0
      %357 = vmatprep.subr.bf16.mxu0 0
      %358 = vmatpush1.bf16.msra.mxu0 0
      %359 = vmatprep.subr.bf16.mxu0 0
      %360 = vmatpush1.bf16.msra.mxu0 0
      %361 = vmatprep.subr.bf16.mxu0 0
      %362 = vmatpush1.bf16.msra.mxu0 0
      %363 = vmatprep.subr.bf16.mxu0 0
      %364 = vmatpush1.bf16.msra.mxu0 0
      %365 = vmatprep.subr.bf16.mxu0 0
      %366 = vmatpush1.bf16.msra.mxu0 0
      %367 = vmatprep.subr.bf16.mxu0 0
      %368 = vmatpush1.bf16.msra.mxu0 0
      %369 = vmatprep.mubr.bf16.mxu0 0
      %370 = vmatmul.mubr.bf16.gmra.mrb[0].mxu0 %v320
      %v371 = vpop.f32.mrb[0].mxu0
      %v372 = vadd.f32 0.0, %v371
      %v373 = vpop.f32.mrb[0].mxu0
      %v374 = vpop.f32.mrb[0].mxu0
      %v375 = vadd.f32 0.0, %v374
      %v376 = vpop.f32.mrb[0].mxu0
      %377 = vmatprep.mubr.bf16.mxu0 0
      %378 = vmatmul.mubr.bf16.gmra.mrb[0].mxu0 %v323
      %v379 = vpop.f32.mrb[0].mxu0
      %v380 = vadd.f32 0.0, %v379
      %v381 = vpop.f32.mrb[0].mxu0
      %v382 = vpop.f32.mrb[0].mxu0
      %v383 = vadd.f32 0.0, %v382
      %v384 = vpop.f32.mrb[0].mxu0
      %385 = vmatprep.mubr.bf16.mxu0 0
      %386 = vmatmul.mubr.bf16.gmra.mrb[0].mxu0 %v326
      %v387 = vpop.f32.mrb[0].mxu0
      %v388 = vadd.f32 0.0, %v387
      %v389 = vpop.f32.mrb[0].mxu0
      %v390 = vpop.f32.mrb[0].mxu0
      %v391 = vadd.f32 0.0, %v390
      %v392 = vpop.f32.mrb[0].mxu0
      %393 = vmatprep.mubr.bf16.mxu0 0
      %394 = vmatmul.mubr.bf16.gmra.mrb[0].mxu0 %v329
      %v395 = vpop.f32.mrb[0].mxu0
      %v396 = vadd.f32 0.0, %v395
      %v397 = vpop.f32.mrb[0].mxu0
      %v398 = vpop.f32.mrb[0].mxu0
      %v399 = vadd.f32 0.0, %v398
      %v400 = vpop.f32.mrb[0].mxu0
      %401 = vmatprep.mubr.bf16.mxu0 0
      %402 = vmatmul.mubr.bf16.gmra.mrb[0].mxu0 %v332
      %v403 = vpop.f32.mrb[0].mxu0
      %v404 = vadd.f32 0.0, %v403
      %v405 = vpop.f32.mrb[0].mxu0
      %v406 = vpop.f32.mrb[0].mxu0
      %v407 = vadd.f32 0.0, %v406
      %v408 = vpop.f32.mrb[0].mxu0
      %409 = vmatprep.mubr.bf16.mxu0 0
      %410 = vmatmul.mubr.bf16.gmra.mrb[0].mxu0 %v335
      %v411 = vpop.f32.mrb[0].mxu0
      %v412 = vadd.f32 0.0, %v411
      %v413 = vpop.f32.mrb[0].mxu0
      %v414 = vpop.f32.mrb[0].mxu0
      %v415 = vadd.f32 0.0, %v414
      %v416 = vpop.f32.mrb[0].mxu0
      %417 = vdwg.mxu0
      %s418 = scalar_lea.vmem %s2, 32
      %v419 = vld [vmem:[%s418] sm:$0xf]
      %v420 = vld [vmem:[%s418 + $0x4] sm:$0xf]
      %v421 = vld [vmem:[%s418 + $0x8] sm:$0xf]
      %v422 = vld [vmem:[%s418 + $0xc] sm:$0xf]
      %v423 = vld [vmem:[%s418 + $0x10] sm:$0xf]
      %v424 = vld [vmem:[%s418 + $0x14] sm:$0xf]
      %v425 = vld [vmem:[%s418 + $0x18] sm:$0xf]
      %v426 = vld [vmem:[%s418 + $0x1c] sm:$0xf]
      %v435 = vunpack.c.l.b16 %v419
      %v436 = vunpack.c.l.b16 %v420
      %v437 = vunpack.c.l.b16 %v421
      %v438 = vunpack.c.l.b16 %v422
      %v439 = vunpack.c.l.b16 %v423
      %v440 = vunpack.c.l.b16 %v424
      %v441 = vunpack.c.l.b16 %v425
      %v442 = vunpack.c.l.b16 %v426
      %v443 = vpack.c.b16 %v436, %v435
      %v444 = vpack.c.b16 %v438, %v437
      %v445 = vpack.c.b16 %v440, %v439
      %v446 = vpack.c.b16 %v442, %v441
      %451 = vmatprep.subr.bf16.mxu0 0
      %452 = vmatpush1.bf16.msra.mxu0 %v443
      %453 = vmatprep.subr.bf16.mxu0 0
      %454 = vmatpush1.bf16.msra.mxu0 %v444
      %455 = vmatprep.subr.bf16.mxu0 0
      %456 = vmatpush1.bf16.msra.mxu0 %v445
      %457 = vmatprep.subr.bf16.mxu0 0
      %458 = vmatpush1.bf16.msra.mxu0 %v446
      %459 = vmatprep.subr.bf16.mxu0 0
      %460 = vmatpush1.bf16.msra.mxu0 0
      %461 = vmatprep.subr.bf16.mxu0 0
      %462 = vmatpush1.bf16.msra.mxu0 0
      %463 = vmatprep.subr.bf16.mxu0 0
      %464 = vmatpush1.bf16.msra.mxu0 0
      %465 = vmatprep.subr.bf16.mxu0 0
      %466 = vmatpush1.bf16.msra.mxu0 0
      %467 = vmatprep.subr.bf16.mxu0 0
      %468 = vmatpush1.bf16.msra.mxu0 0
      %469 = vmatprep.subr.bf16.mxu0 0
      %470 = vmatpush1.bf16.msra.mxu0 0
      %471 = vmatprep.subr.bf16.mxu0 0
      %472 = vmatpush1.bf16.msra.mxu0 0
      %473 = vmatprep.subr.bf16.mxu0 0
      %474 = vmatpush1.bf16.msra.mxu0 0
      %475 = vmatprep.subr.bf16.mxu0 0
      %476 = vmatpush1.bf16.msra.mxu0 0
      %477 = vmatprep.subr.bf16.mxu0 0
      %478 = vmatpush1.bf16.msra.mxu0 0
      %479 = vmatprep.subr.bf16.mxu0 0
      %480 = vmatpush1.bf16.msra.mxu0 0
      %481 = vmatprep.subr.bf16.mxu0 0
      %482 = vmatpush1.bf16.msra.mxu0 0
      %483 = vmatprep.mubr.bf16.mxu0 0
      %484 = vmatmul.mubr.bf16.gmra.mrb[0].mxu0 %v320
      %v485 = vpop.f32.mrb[0].mxu0
      %v486 = vadd.f32 0.0, %v485
      %v487 = vpop.f32.mrb[0].mxu0
      %v488 = vpop.f32.mrb[0].mxu0
      %v489 = vadd.f32 0.0, %v488
      %v490 = vpop.f32.mrb[0].mxu0
      %491 = vmatprep.mubr.bf16.mxu0 0
      %492 = vmatmul.mubr.bf16.gmra.mrb[0].mxu0 %v323
      %v493 = vpop.f32.mrb[0].mxu0
      %v494 = vadd.f32 0.0, %v493
      %v495 = vpop.f32.mrb[0].mxu0
      %v496 = vpop.f32.mrb[0].mxu0
      %v497 = vadd.f32 0.0, %v496
      %v498 = vpop.f32.mrb[0].mxu0
      %499 = vmatprep.mubr.bf16.mxu0 0
      %500 = vmatmul.mubr.bf16.gmra.mrb[0].mxu0 %v326
      %v501 = vpop.f32.mrb[0].mxu0
      %v502 = vadd.f32 0.0, %v501
      %v503 = vpop.f32.mrb[0].mxu0
      %v504 = vpop.f32.mrb[0].mxu0
      %v505 = vadd.f32 0.0, %v504
      %v506 = vpop.f32.mrb[0].mxu0
      %507 = vmatprep.mubr.bf16.mxu0 0
      %508 = vmatmul.mubr.bf16.gmra.mrb[0].mxu0 %v329
      %v509 = vpop.f32.mrb[0].mxu0
      %v510 = vadd.f32 0.0, %v509
      %v511 = vpop.f32.mrb[0].mxu0
      %v512 = vpop.f32.mrb[0].mxu0
      %v513 = vadd.f32 0.0, %v512
      %v514 = vpop.f32.mrb[0].mxu0
      %515 = vmatprep.mubr.bf16.mxu0 0
      %516 = vmatmul.mubr.bf16.gmra.mrb[0].mxu0 %v332
      %v517 = vpop.f32.mrb[0].mxu0
      %v518 = vadd.f32 0.0, %v517
      %v519 = vpop.f32.mrb[0].mxu0
      %v520 = vpop.f32.mrb[0].mxu0
      %v521 = vadd.f32 0.0, %v520
      %v522 = vpop.f32.mrb[0].mxu0
      %523 = vmatprep.mubr.bf16.mxu0 0
      %524 = vmatmul.mubr.bf16.gmra.mrb[0].mxu0 %v335
      %v525 = vpop.f32.mrb[0].mxu0
      %v526 = vadd.f32 0.0, %v525
      %v527 = vpop.f32.mrb[0].mxu0
      %v528 = vpop.f32.mrb[0].mxu0
      %v529 = vadd.f32 0.0, %v528
      %v530 = vpop.f32.mrb[0].mxu0
      %531 = vdwg.mxu0
      %s532 = scalar_lea.vmem %s2, 64
      %v533 = vld [vmem:[%s532] sm:$0xf]
      %v534 = vld [vmem:[%s532 + $0x4] sm:$0xf]
      %v535 = vld [vmem:[%s532 + $0x8] sm:$0xf]
      %v536 = vld [vmem:[%s532 + $0xc] sm:$0xf]
      %v537 = vld [vmem:[%s532 + $0x10] sm:$0xf]
      %v538 = vld [vmem:[%s532 + $0x14] sm:$0xf]
      %v539 = vld [vmem:[%s532 + $0x18] sm:$0xf]
      %v540 = vld [vmem:[%s532 + $0x1c] sm:$0xf]
      %v549 = vunpack.c.l.b16 %v533
      %v550 = vunpack.c.l.b16 %v534
      %v551 = vunpack.c.l.b16 %v535
      %v552 = vunpack.c.l.b16 %v536
      %v553 = vunpack.c.l.b16 %v537
      %v554 = vunpack.c.l.b16 %v538
      %v555 = vunpack.c.l.b16 %v539
      %v556 = vunpack.c.l.b16 %v540
      %v557 = vpack.c.b16 %v550, %v549
      %v558 = vpack.c.b16 %v552, %v551
      %v559 = vpack.c.b16 %v554, %v553
      %v560 = vpack.c.b16 %v556, %v555
      %565 = vmatprep.subr.bf16.mxu0 0
      %566 = vmatpush1.bf16.msra.mxu0 %v557
      %567 = vmatprep.subr.bf16.mxu0 0
      %568 = vmatpush1.bf16.msra.mxu0 %v558
      %569 = vmatprep.subr.bf16.mxu0 0
      %570 = vmatpush1.bf16.msra.mxu0 %v559
      %571 = vmatprep.subr.bf16.mxu0 0
      %572 = vmatpush1.bf16.msra.mxu0 %v560
      %573 = vmatprep.subr.bf16.mxu0 0
      %574 = vmatpush1.bf16.msra.mxu0 0
      %575 = vmatprep.subr.bf16.mxu0 0
      %576 = vmatpush1.bf16.msra.mxu0 0
      %577 = vmatprep.subr.bf16.mxu0 0
      %578 = vmatpush1.bf16.msra.mxu0 0
      %579 = vmatprep.subr.bf16.mxu0 0
      %580 = vmatpush1.bf16.msra.mxu0 0
      %581 = vmatprep.subr.bf16.mxu0 0
      %582 = vmatpush1.bf16.msra.mxu0 0
      %583 = vmatprep.subr.bf16.mxu0 0
      %584 = vmatpush1.bf16.msra.mxu0 0
      %585 = vmatprep.subr.bf16.mxu0 0
      %586 = vmatpush1.bf16.msra.mxu0 0
      %587 = vmatprep.subr.bf16.mxu0 0
      %588 = vmatpush1.bf16.msra.mxu0 0
      %589 = vmatprep.subr.bf16.mxu0 0
      %590 = vmatpush1.bf16.msra.mxu0 0
      %591 = vmatprep.subr.bf16.mxu0 0
      %592 = vmatpush1.bf16.msra.mxu0 0
      %593 = vmatprep.subr.bf16.mxu0 0
      %594 = vmatpush1.bf16.msra.mxu0 0
      %595 = vmatprep.subr.bf16.mxu0 0
      %596 = vmatpush1.bf16.msra.mxu0 0
      %597 = vmatprep.mubr.bf16.mxu0 0
      %598 = vmatmul.mubr.bf16.gmra.mrb[0].mxu0 %v320
      %v599 = vpop.f32.mrb[0].mxu0
      %v600 = vadd.f32 0.0, %v599
      %v601 = vpop.f32.mrb[0].mxu0
      %v602 = vpop.f32.mrb[0].mxu0
      %v603 = vadd.f32 0.0, %v602
      %v604 = vpop.f32.mrb[0].mxu0
      %605 = vmatprep.mubr.bf16.mxu0 0
      %606 = vmatmul.mubr.bf16.gmra.mrb[0].mxu0 %v323
      %v607 = vpop.f32.mrb[0].mxu0
      %v608 = vadd.f32 0.0, %v607
      %v609 = vpop.f32.mrb[0].mxu0
      %v610 = vpop.f32.mrb[0].mxu0
      %v611 = vadd.f32 0.0, %v610
      %v612 = vpop.f32.mrb[0].mxu0
      %613 = vmatprep.mubr.bf16.mxu0 0
      %614 = vmatmul.mubr.bf16.gmra.mrb[0].mxu0 %v326
      %v615 = vpop.f32.mrb[0].mxu0
      %v616 = vadd.f32 0.0, %v615
      %v617 = vpop.f32.mrb[0].mxu0
      %v618 = vpop.f32.mrb[0].mxu0
      %v619 = vadd.f32 0.0, %v618
      %v620 = vpop.f32.mrb[0].mxu0
      %621 = vmatprep.mubr.bf16.mxu0 0
      %622 = vmatmul.mubr.bf16.gmra.mrb[0].mxu0 %v329
      %v623 = vpop.f32.mrb[0].mxu0
      %v624 = vadd.f32 0.0, %v623
      %v625 = vpop.f32.mrb[0].mxu0
      %v626 = vpop.f32.mrb[0].mxu0
      %v627 = vadd.f32 0.0, %v626
      %v628 = vpop.f32.mrb[0].mxu0
      %629 = vmatprep.mubr.bf16.mxu0 0
      %630 = vmatmul.mubr.bf16.gmra.mrb[0].mxu0 %v332
      %v631 = vpop.f32.mrb[0].mxu0
      %v632 = vadd.f32 0.0, %v631
      %v633 = vpop.f32.mrb[0].mxu0
      %v634 = vpop.f32.mrb[0].mxu0
      %v635 = vadd.f32 0.0, %v634
      %v636 = vpop.f32.mrb[0].mxu0
      %637 = vmatprep.mubr.bf16.mxu0 0
      %638 = vmatmul.mubr.bf16.gmra.mrb[0].mxu0 %v335
      %v639 = vpop.f32.mrb[0].mxu0
      %v640 = vadd.f32 0.0, %v639
      %v641 = vpop.f32.mrb[0].mxu0
      %v642 = vpop.f32.mrb[0].mxu0
      %v643 = vadd.f32 0.0, %v642
      %v644 = vpop.f32.mrb[0].mxu0
      %645 = vdwg.mxu0
      %vm658 = vcmask 1040384
      %v659 = vrot.slane %v372, 7
      %v660 = vrot.slane %v375, 7
      %v661 = vsel %vm658, %v659, %v660
      %v662 = vrot.slane %v380, 7
      %v663 = vsel %vm658, %v660, %v662
      %v664 = vrot.slane %v383, 7
      %v665 = vsel %vm658, %v662, %v664
      %v666 = vrot.slane %v388, 7
      %v667 = vsel %vm658, %v664, %v666
      %v668 = vrot.slane %v391, 7
      %v669 = vsel %vm658, %v666, %v668
      %v670 = vrot.slane %v396, 7
      %v671 = vsel %vm658, %v668, %v670
      %v672 = vrot.slane %v399, 7
      %v673 = vsel %vm658, %v670, %v672
      %v674 = vrot.slane %v404, 7
      %v675 = vsel %vm658, %v672, %v674
      %v676 = vrot.slane %v407, 7
      %v677 = vsel %vm658, %v674, %v676
      %v678 = vrot.slane %v412, 7
      %v679 = vsel %vm658, %v676, %v678
      %v680 = vrot.slane %v415, 7
      %v681 = vsel %vm658, %v678, %v680
      %v694 = vsel %vm658, 0.0, %v659
      %v695 = vadd.f32 %v694, %v486
      %v696 = vadd.f32 %v661, %v489
      %v697 = vadd.f32 %v663, %v494
      %v698 = vadd.f32 %v665, %v497
      %v699 = vadd.f32 %v667, %v502
      %v700 = vadd.f32 %v669, %v505
      %v701 = vadd.f32 %v671, %v510
      %v702 = vadd.f32 %v673, %v513
      %v703 = vadd.f32 %v675, %v518
      %v704 = vadd.f32 %v677, %v521
      %v705 = vadd.f32 %v679, %v526
      %v706 = vadd.f32 %v681, %v529
      %vm719 = vcmask 1046528
      %v720 = vrot.slane %v600, 1
      %v721 = vrot.slane %v603, 1
      %v722 = vsel %vm719, %v720, %v721
      %v723 = vrot.slane %v608, 1
      %v724 = vsel %vm719, %v721, %v723
      %v725 = vrot.slane %v611, 1
      %v726 = vsel %vm719, %v723, %v725
      %v727 = vrot.slane %v616, 1
      %v728 = vsel %vm719, %v725, %v727
      %v729 = vrot.slane %v619, 1
      %v730 = vsel %vm719, %v727, %v729
      %v731 = vrot.slane %v624, 1
      %v732 = vsel %vm719, %v729, %v731
      %v733 = vrot.slane %v627, 1
      %v734 = vsel %vm719, %v731, %v733
      %v735 = vrot.slane %v632, 1
      %v736 = vsel %vm719, %v733, %v735
      %v737 = vrot.slane %v635, 1
      %v738 = vsel %vm719, %v735, %v737
      %v739 = vrot.slane %v640, 1
      %v740 = vsel %vm719, %v737, %v739
      %v741 = vrot.slane %v643, 1
      %v742 = vsel %vm719, %v739, %v741
      %v755 = vsel %vm719, %v741, 0.0
      %v756 = vadd.f32 %v695, %v722
      %v757 = vadd.f32 %v696, %v724
      %v758 = vadd.f32 %v697, %v726
      %v759 = vadd.f32 %v698, %v728
      %v760 = vadd.f32 %v699, %v730
      %v761 = vadd.f32 %v700, %v732
      %v762 = vadd.f32 %v701, %v734
      %v763 = vadd.f32 %v702, %v736
      %v764 = vadd.f32 %v703, %v738
      %v765 = vadd.f32 %v704, %v740
      %v766 = vadd.f32 %v705, %v742
      %v767 = vadd.f32 %v706, %v755
      %v768 = vld [vmem:[%s3] sm:$0x1]
      %v769 = vlaneseq
      %v770 = vshrl.u32 %v769, 7
      %v771 = vsub.s32 0, %v770
      %v772 = vrot.slane %v768, %v771
      %v773 = vadd.f32 %v756, %v772
      %v774 = vadd.f32 %v757, %v772
      %v775 = vadd.f32 %v758, %v772
      %v776 = vadd.f32 %v759, %v772
      %v777 = vadd.f32 %v760, %v772
      %v778 = vadd.f32 %v761, %v772
      %v779 = vadd.f32 %v762, %v772
      %v780 = vadd.f32 %v763, %v772
      %v781 = vadd.f32 %v764, %v772
      %v782 = vadd.f32 %v765, %v772
      %v783 = vadd.f32 %v766, %v772
      %v784 = vadd.f32 %v767, %v772
      %v785 = vmax.f32 %v773, 0.0
      %v786 = vmax.f32 %v774, 0.0
      %v787 = vmax.f32 %v775, 0.0
      %v788 = vmax.f32 %v776, 0.0
      %v789 = vmax.f32 %v777, 0.0
      %v790 = vmax.f32 %v778, 0.0
      %v791 = vmax.f32 %v779, 0.0
      %v792 = vmax.f32 %v780, 0.0
      %v793 = vmax.f32 %v781, 0.0
      %v794 = vmax.f32 %v782, 0.0
      %v795 = vmax.f32 %v783, 0.0
      %v796 = vmax.f32 %v784, 0.0
      %v797 = vld [vmem:[%s3 + $0x1] sm:$0x1]
      %v798 = vlaneseq
      %v799 = vshrl.u32 %v798, 7
      %v800 = vsub.s32 0, %v799
      %v801 = vrot.slane %v797, %v800
      %v802 = vmul.f32 %v785, %v801
      %v803 = vmul.f32 %v786, %v801
      %v804 = vmul.f32 %v787, %v801
      %v805 = vmul.f32 %v788, %v801
      %v806 = vmul.f32 %v789, %v801
      %v807 = vmul.f32 %v790, %v801
      %v808 = vmul.f32 %v791, %v801
      %v809 = vmul.f32 %v792, %v801
      %v810 = vmul.f32 %v793, %v801
      %v811 = vmul.f32 %v794, %v801
      %v812 = vmul.f32 %v795, %v801
      %v813 = vmul.f32 %v796, %v801
      %v814 = vld [vmem:[%s3 + $0x2] sm:$0x1]
      %v815 = vlaneseq
      %v816 = vshrl.u32 %v815, 7
      %v817 = vsub.s32 0, %v816
      %v818 = vrot.slane %v814, %v817
      %v819 = vadd.f32 %v802, %v818
      %v820 = vadd.f32 %v803, %v818
      %v821 = vadd.f32 %v804, %v818
      %v822 = vadd.f32 %v805, %v818
      %v823 = vadd.f32 %v806, %v818
      %v824 = vadd.f32 %v807, %v818
      %v825 = vadd.f32 %v808, %v818
      %v826 = vadd.f32 %v809, %v818
      %v827 = vadd.f32 %v810, %v818
      %v828 = vadd.f32 %v811, %v818
      %v829 = vadd.f32 %v812, %v818
      %v830 = vadd.f32 %v813, %v818
      %832 = vset.pattern.permute.xlu0 0
      %833 = vperm.xlu0 %832, %v274
      %v834 = vpop.permute.xlu0 %833
      %837 = vset.pattern.permute.xlu0 0
      %838 = vperm.xlu0 %837, %v275
      %v839 = vpop.permute.xlu0 %838
      %842 = vset.pattern.permute.xlu0 0
      %843 = vperm.xlu0 %842, %v276
      %v844 = vpop.permute.xlu0 %843
      %847 = vset.pattern.permute.xlu0 0
      %848 = vperm.xlu0 %847, %v277
      %v849 = vpop.permute.xlu0 %848
      %852 = vset.pattern.permute.xlu0 0
      %853 = vperm.xlu0 %852, %v278
      %v854 = vpop.permute.xlu0 %853
      %857 = vset.pattern.permute.xlu0 0
      %858 = vperm.xlu0 %857, %v279
      %v859 = vpop.permute.xlu0 %858
      %862 = vset.pattern.permute.xlu0 0
      %863 = vperm.xlu0 %862, %v280
      %v864 = vpop.permute.xlu0 %863
      %867 = vset.pattern.permute.xlu0 0
      %868 = vperm.xlu0 %867, %v281
      %v869 = vpop.permute.xlu0 %868
      %872 = vset.pattern.permute.xlu0 0
      %873 = vperm.xlu0 %872, %v282
      %v874 = vpop.permute.xlu0 %873
      %877 = vset.pattern.permute.xlu0 0
      %878 = vperm.xlu0 %877, %v283
      %v879 = vpop.permute.xlu0 %878
      %882 = vset.pattern.permute.xlu0 0
      %883 = vperm.xlu0 %882, %v284
      %v884 = vpop.permute.xlu0 %883
      %887 = vset.pattern.permute.xlu0 0
      %888 = vperm.xlu0 %887, %v285
      %v889 = vpop.permute.xlu0 %888
      %v891 = vmul.f32 %v819, %v834
      %v892 = vmul.f32 %v820, %v839
      %v893 = vmul.f32 %v821, %v844
      %v894 = vmul.f32 %v822, %v849
      %v895 = vmul.f32 %v823, %v854
      %v896 = vmul.f32 %v824, %v859
      %v897 = vmul.f32 %v825, %v864
      %v898 = vmul.f32 %v826, %v869
      %v899 = vmul.f32 %v827, %v874
      %v900 = vmul.f32 %v828, %v879
      %v901 = vmul.f32 %v829, %v884
      %v902 = vmul.f32 %v830, %v889
      %v903 = vpack.c.bf16 %v892, %v891
      %v904 = vpack.c.bf16 %v894, %v893
      %v905 = vpack.c.bf16 %v896, %v895
      %v906 = vpack.c.bf16 %v898, %v897
      %v907 = vpack.c.bf16 %v900, %v899
      %v908 = vpack.c.bf16 %v902, %v901
      %v909 = vld [vmem:[%s4] sm:$0xf]
      %v910 = vld [vmem:[%s4 + $0x4] sm:$0xf]
      %v911 = vld [vmem:[%s4 + $0x8] sm:$0xf]
      %v912 = vld [vmem:[%s4 + $0xc] sm:$0xf]
      %v913 = vld [vmem:[%s4 + $0x10] sm:$0xf]
      %v914 = vld [vmem:[%s4 + $0x14] sm:$0xf]
      %v915 = vld [vmem:[%s4 + $0x18] sm:$0xf]
      %v916 = vld [vmem:[%s4 + $0x1c] sm:$0xf]
      %v917 = vld [vmem:[%s4 + $0x20] sm:$0xf]
      %v918 = vld [vmem:[%s4 + $0x24] sm:$0xf]
      %v919 = vld [vmem:[%s4 + $0x28] sm:$0xf]
      %v920 = vld [vmem:[%s4 + $0x2c] sm:$0xf]
      %v921 = vld [vmem:[%s4 + $0x30] sm:$0xf]
      %v922 = vld [vmem:[%s4 + $0x34] sm:$0xf]
      %v923 = vld [vmem:[%s4 + $0x38] sm:$0xf]
      %v924 = vld [vmem:[%s4 + $0x3c] sm:$0xf]
      %s925 = scalar_lea.vmem %s4, 64
      %v926 = vld [vmem:[%s925] sm:$0xf]
      %v927 = vld [vmem:[%s925 + $0x4] sm:$0xf]
      %v928 = vld [vmem:[%s925 + $0x8] sm:$0xf]
      %v929 = vld [vmem:[%s925 + $0xc] sm:$0xf]
      %v930 = vld [vmem:[%s925 + $0x10] sm:$0xf]
      %v931 = vld [vmem:[%s925 + $0x14] sm:$0xf]
      %v932 = vld [vmem:[%s925 + $0x18] sm:$0xf]
      %v933 = vld [vmem:[%s925 + $0x1c] sm:$0xf]
      %v934 = vld [vmem:[%s925 + $0x20] sm:$0xf]
      %v935 = vld [vmem:[%s925 + $0x24] sm:$0xf]
      %v936 = vld [vmem:[%s925 + $0x28] sm:$0xf]
      %v937 = vld [vmem:[%s925 + $0x2c] sm:$0xf]
      %v938 = vld [vmem:[%s925 + $0x30] sm:$0xf]
      %v939 = vld [vmem:[%s925 + $0x34] sm:$0xf]
      %v940 = vld [vmem:[%s925 + $0x38] sm:$0xf]
      %v941 = vld [vmem:[%s925 + $0x3c] sm:$0xf]
      %v958 = vunpack.c.l.b16 %v926
      %v959 = vunpack.c.l.b16 %v927
      %v960 = vunpack.c.l.b16 %v928
      %v961 = vunpack.c.l.b16 %v929
      %v962 = vunpack.c.l.b16 %v930
      %v963 = vunpack.c.l.b16 %v931
      %v964 = vunpack.c.l.b16 %v932
      %v965 = vunpack.c.l.b16 %v933
      %v966 = vunpack.c.l.b16 %v934
      %v967 = vunpack.c.l.b16 %v935
      %v968 = vunpack.c.l.b16 %v936
      %v969 = vunpack.c.l.b16 %v937
      %v970 = vunpack.c.l.b16 %v938
      %v971 = vunpack.c.l.b16 %v939
      %v972 = vunpack.c.l.b16 %v940
      %v973 = vunpack.c.l.b16 %v941
      %v974 = vpack.c.b16 %v959, %v958
      %v975 = vpack.c.b16 %v961, %v960
      %v976 = vpack.c.b16 %v963, %v962
      %v977 = vpack.c.b16 %v965, %v964
      %v978 = vpack.c.b16 %v967, %v966
      %v979 = vpack.c.b16 %v969, %v968
      %v980 = vpack.c.b16 %v971, %v970
      %v981 = vpack.c.b16 %v973, %v972
      %990 = vmatprep.subr.bf16.mxu0 0
      %991 = vmatpush1.bf16.msra.mxu0 %v974
      %992 = vmatprep.subr.bf16.mxu0 0
      %993 = vmatpush1.bf16.msra.mxu0 %v975
      %994 = vmatprep.subr.bf16.mxu0 0
      %995 = vmatpush1.bf16.msra.mxu0 %v976
      %996 = vmatprep.subr.bf16.mxu0 0
      %997 = vmatpush1.bf16.msra.mxu0 %v977
      %998 = vmatprep.subr.bf16.mxu0 0
      %999 = vmatpush1.bf16.msra.mxu0 %v978
      %1000 = vmatprep.subr.bf16.mxu0 0
      %1001 = vmatpush1.bf16.msra.mxu0 %v979
      %1002 = vmatprep.subr.bf16.mxu0 0
      %1003 = vmatpush1.bf16.msra.mxu0 %v980
      %1004 = vmatprep.subr.bf16.mxu0 0
      %1005 = vmatpush1.bf16.msra.mxu0 %v981
      %1006 = vmatprep.subr.bf16.mxu0 0
      %1007 = vmatpush1.bf16.msra.mxu0 0
      %1008 = vmatprep.subr.bf16.mxu0 0
      %1009 = vmatpush1.bf16.msra.mxu0 0
      %1010 = vmatprep.subr.bf16.mxu0 0
      %1011 = vmatpush1.bf16.msra.mxu0 0
      %1012 = vmatprep.subr.bf16.mxu0 0
      %1013 = vmatpush1.bf16.msra.mxu0 0
      %1014 = vmatprep.subr.bf16.mxu0 0
      %1015 = vmatpush1.bf16.msra.mxu0 0
      %1016 = vmatprep.subr.bf16.mxu0 0
      %1017 = vmatpush1.bf16.msra.mxu0 0
      %1018 = vmatprep.subr.bf16.mxu0 0
      %1019 = vmatpush1.bf16.msra.mxu0 0
      %1020 = vmatprep.subr.bf16.mxu0 0
      %1021 = vmatpush1.bf16.msra.mxu0 0
      %1022 = vmatprep.mubr.bf16.mxu0 0
      %1023 = vmatmul.mubr.bf16.gmra.mrb[0].mxu0 %v903
      %v1024 = vpop.f32.mrb[0].mxu0
      %v1025 = vadd.f32 0.0, %v1024
      %v1026 = vpop.f32.mrb[0].mxu0
      %v1027 = vpop.f32.mrb[0].mxu0
      %v1028 = vadd.f32 0.0, %v1027
      %v1029 = vpop.f32.mrb[0].mxu0
      %1030 = vmatprep.mubr.bf16.mxu0 0
      %1031 = vmatmul.mubr.bf16.gmra.mrb[0].mxu0 %v904
      %v1032 = vpop.f32.mrb[0].mxu0
      %v1033 = vadd.f32 0.0, %v1032
      %v1034 = vpop.f32.mrb[0].mxu0
      %v1035 = vpop.f32.mrb[0].mxu0
      %v1036 = vadd.f32 0.0, %v1035
      %v1037 = vpop.f32.mrb[0].mxu0
      %1038 = vmatprep.mubr.bf16.mxu0 0
      %1039 = vmatmul.mubr.bf16.gmra.mrb[0].mxu0 %v905
      %v1040 = vpop.f32.mrb[0].mxu0
      %v1041 = vadd.f32 0.0, %v1040
      %v1042 = vpop.f32.mrb[0].mxu0
      %v1043 = vpop.f32.mrb[0].mxu0
      %v1044 = vadd.f32 0.0, %v1043
      %v1045 = vpop.f32.mrb[0].mxu0
      %1046 = vmatprep.mubr.bf16.mxu0 0
      %1047 = vmatmul.mubr.bf16.gmra.mrb[0].mxu0 %v906
      %v1048 = vpop.f32.mrb[0].mxu0
      %v1049 = vadd.f32 0.0, %v1048
      %v1050 = vpop.f32.mrb[0].mxu0
      %v1051 = vpop.f32.mrb[0].mxu0
      %v1052 = vadd.f32 0.0, %v1051
      %v1053 = vpop.f32.mrb[0].mxu0
      %1054 = vmatprep.mubr.bf16.mxu0 0
      %1055 = vmatmul.mubr.bf16.gmra.mrb[0].mxu0 %v907
      %v1056 = vpop.f32.mrb[0].mxu0
      %v1057 = vadd.f32 0.0, %v1056
      %v1058 = vpop.f32.mrb[0].mxu0
      %v1059 = vpop.f32.mrb[0].mxu0
      %v1060 = vadd.f32 0.0, %v1059
      %v1061 = vpop.f32.mrb[0].mxu0
      %1062 = vmatprep.mubr.bf16.mxu0 0
      %1063 = vmatmul.mubr.bf16.gmra.mrb[0].mxu0 %v908
      %v1064 = vpop.f32.mrb[0].mxu0
      %v1065 = vadd.f32 0.0, %v1064
      %v1066 = vpop.f32.mrb[0].mxu0
      %v1067 = vpop.f32.mrb[0].mxu0
      %v1068 = vadd.f32 0.0, %v1067
      %v1069 = vpop.f32.mrb[0].mxu0
      %1070 = vdwg.mxu0
      %s1071 = scalar_lea.vmem %s4, 128
      %v1072 = vld [vmem:[%s1071] sm:$0xf]
      %v1073 = vld [vmem:[%s1071 + $0x4] sm:$0xf]
      %v1074 = vld [vmem:[%s1071 + $0x8] sm:$0xf]
      %v1075 = vld [vmem:[%s1071 + $0xc] sm:$0xf]
      %v1076 = vld [vmem:[%s1071 + $0x10] sm:$0xf]
      %v1077 = vld [vmem:[%s1071 + $0x14] sm:$0xf]
      %v1078 = vld [vmem:[%s1071 + $0x18] sm:$0xf]
      %v1079 = vld [vmem:[%s1071 + $0x1c] sm:$0xf]
      %v1080 = vld [vmem:[%s1071 + $0x20] sm:$0xf]
      %v1081 = vld [vmem:[%s1071 + $0x24] sm:$0xf]
      %v1082 = vld [vmem:[%s1071 + $0x28] sm:$0xf]
      %v1083 = vld [vmem:[%s1071 + $0x2c] sm:$0xf]
      %v1084 = vld [vmem:[%s1071 + $0x30] sm:$0xf]
      %v1085 = vld [vmem:[%s1071 + $0x34] sm:$0xf]
      %v1086 = vld [vmem:[%s1071 + $0x38] sm:$0xf]
      %v1087 = vld [vmem:[%s1071 + $0x3c] sm:$0xf]
      %v1104 = vunpack.c.l.b16 %v1072
      %v1105 = vunpack.c.l.b16 %v1073
      %v1106 = vunpack.c.l.b16 %v1074
      %v1107 = vunpack.c.l.b16 %v1075
      %v1108 = vunpack.c.l.b16 %v1076
      %v1109 = vunpack.c.l.b16 %v1077
      %v1110 = vunpack.c.l.b16 %v1078
      %v1111 = vunpack.c.l.b16 %v1079
      %v1112 = vunpack.c.l.b16 %v1080
      %v1113 = vunpack.c.l.b16 %v1081
      %v1114 = vunpack.c.l.b16 %v1082
      %v1115 = vunpack.c.l.b16 %v1083
      %v1116 = vunpack.c.l.b16 %v1084
      %v1117 = vunpack.c.l.b16 %v1085
      %v1118 = vunpack.c.l.b16 %v1086
      %v1119 = vunpack.c.l.b16 %v1087
      %v1120 = vpack.c.b16 %v1105, %v1104
      %v1121 = vpack.c.b16 %v1107, %v1106
      %v1122 = vpack.c.b16 %v1109, %v1108
      %v1123 = vpack.c.b16 %v1111, %v1110
      %v1124 = vpack.c.b16 %v1113, %v1112
      %v1125 = vpack.c.b16 %v1115, %v1114
      %v1126 = vpack.c.b16 %v1117, %v1116
      %v1127 = vpack.c.b16 %v1119, %v1118
      %1136 = vmatprep.subr.bf16.mxu0 0
      %1137 = vmatpush1.bf16.msra.mxu0 %v1120
      %1138 = vmatprep.subr.bf16.mxu0 0
      %1139 = vmatpush1.bf16.msra.mxu0 %v1121
      %1140 = vmatprep.subr.bf16.mxu0 0
      %1141 = vmatpush1.bf16.msra.mxu0 %v1122
      %1142 = vmatprep.subr.bf16.mxu0 0
      %1143 = vmatpush1.bf16.msra.mxu0 %v1123
      %1144 = vmatprep.subr.bf16.mxu0 0
      %1145 = vmatpush1.bf16.msra.mxu0 %v1124
      %1146 = vmatprep.subr.bf16.mxu0 0
      %1147 = vmatpush1.bf16.msra.mxu0 %v1125
      %1148 = vmatprep.subr.bf16.mxu0 0
      %1149 = vmatpush1.bf16.msra.mxu0 %v1126
      %1150 = vmatprep.subr.bf16.mxu0 0
      %1151 = vmatpush1.bf16.msra.mxu0 %v1127
      %1152 = vmatprep.subr.bf16.mxu0 0
      %1153 = vmatpush1.bf16.msra.mxu0 0
      %1154 = vmatprep.subr.bf16.mxu0 0
      %1155 = vmatpush1.bf16.msra.mxu0 0
      %1156 = vmatprep.subr.bf16.mxu0 0
      %1157 = vmatpush1.bf16.msra.mxu0 0
      %1158 = vmatprep.subr.bf16.mxu0 0
      %1159 = vmatpush1.bf16.msra.mxu0 0
      %1160 = vmatprep.subr.bf16.mxu0 0
      %1161 = vmatpush1.bf16.msra.mxu0 0
      %1162 = vmatprep.subr.bf16.mxu0 0
      %1163 = vmatpush1.bf16.msra.mxu0 0
      %1164 = vmatprep.subr.bf16.mxu0 0
      %1165 = vmatpush1.bf16.msra.mxu0 0
      %1166 = vmatprep.subr.bf16.mxu0 0
      %1167 = vmatpush1.bf16.msra.mxu0 0
      %1168 = vmatprep.mubr.bf16.mxu0 0
      %1169 = vmatmul.mubr.bf16.gmra.mrb[0].mxu0 %v903
      %v1170 = vpop.f32.mrb[0].mxu0
      %v1171 = vadd.f32 0.0, %v1170
      %v1172 = vpop.f32.mrb[0].mxu0
      %v1173 = vpop.f32.mrb[0].mxu0
      %v1174 = vadd.f32 0.0, %v1173
      %v1175 = vpop.f32.mrb[0].mxu0
      %1176 = vmatprep.mubr.bf16.mxu0 0
      %1177 = vmatmul.mubr.bf16.gmra.mrb[0].mxu0 %v904
      %v1178 = vpop.f32.mrb[0].mxu0
      %v1179 = vadd.f32 0.0, %v1178
      %v1180 = vpop.f32.mrb[0].mxu0
      %v1181 = vpop.f32.mrb[0].mxu0
      %v1182 = vadd.f32 0.0, %v1181
      %v1183 = vpop.f32.mrb[0].mxu0
      %1184 = vmatprep.mubr.bf16.mxu0 0
      %1185 = vmatmul.mubr.bf16.gmra.mrb[0].mxu0 %v905
      %v1186 = vpop.f32.mrb[0].mxu0
      %v1187 = vadd.f32 0.0, %v1186
      %v1188 = vpop.f32.mrb[0].mxu0
      %v1189 = vpop.f32.mrb[0].mxu0
      %v1190 = vadd.f32 0.0, %v1189
      %v1191 = vpop.f32.mrb[0].mxu0
      %1192 = vmatprep.mubr.bf16.mxu0 0
      %1193 = vmatmul.mubr.bf16.gmra.mrb[0].mxu0 %v906
      %v1194 = vpop.f32.mrb[0].mxu0
      %v1195 = vadd.f32 0.0, %v1194
      %v1196 = vpop.f32.mrb[0].mxu0
      %v1197 = vpop.f32.mrb[0].mxu0
      %v1198 = vadd.f32 0.0, %v1197
      %v1199 = vpop.f32.mrb[0].mxu0
      %1200 = vmatprep.mubr.bf16.mxu0 0
      %1201 = vmatmul.mubr.bf16.gmra.mrb[0].mxu0 %v907
      %v1202 = vpop.f32.mrb[0].mxu0
      %v1203 = vadd.f32 0.0, %v1202
      %v1204 = vpop.f32.mrb[0].mxu0
      %v1205 = vpop.f32.mrb[0].mxu0
      %v1206 = vadd.f32 0.0, %v1205
      %v1207 = vpop.f32.mrb[0].mxu0
      %1208 = vmatprep.mubr.bf16.mxu0 0
      %1209 = vmatmul.mubr.bf16.gmra.mrb[0].mxu0 %v908
      %v1210 = vpop.f32.mrb[0].mxu0
      %v1211 = vadd.f32 0.0, %v1210
      %v1212 = vpop.f32.mrb[0].mxu0
      %v1213 = vpop.f32.mrb[0].mxu0
      %v1214 = vadd.f32 0.0, %v1213
      %v1215 = vpop.f32.mrb[0].mxu0
      %1216 = vdwg.mxu0
      %v1229 = vrot.slane %v1025, 1
      %v1230 = vrot.slane %v1028, 1
      %v1231 = vsel %vm719, %v1229, %v1230
      %v1232 = vrot.slane %v1033, 1
      %v1233 = vsel %vm719, %v1230, %v1232
      %v1234 = vrot.slane %v1036, 1
      %v1235 = vrot.slane %v1041, 1
      %v1236 = vsel %vm719, %v1234, %v1235
      %v1237 = vrot.slane %v1044, 1
      %v1238 = vsel %vm719, %v1235, %v1237
      %v1239 = vrot.slane %v1049, 1
      %v1240 = vrot.slane %v1052, 1
      %v1241 = vsel %vm719, %v1239, %v1240
      %v1242 = vrot.slane %v1057, 1
      %v1243 = vsel %vm719, %v1240, %v1242
      %v1244 = vrot.slane %v1060, 1
      %v1245 = vrot.slane %v1065, 1
      %v1246 = vsel %vm719, %v1244, %v1245
      %v1247 = vrot.slane %v1068, 1
      %v1248 = vsel %vm719, %v1245, %v1247
      %v1273 = vunpack.c.l.b16 %v909
      %v1274 = vunpack.c.l.b16 %v910
      %v1275 = vunpack.c.l.b16 %v911
      %v1276 = vunpack.c.l.b16 %v912
      %v1277 = vunpack.c.l.b16 %v913
      %v1278 = vunpack.c.l.b16 %v914
      %v1279 = vunpack.c.l.b16 %v915
      %v1280 = vunpack.c.l.b16 %v916
      %v1281 = vunpack.c.l.b16 %v917
      %v1282 = vunpack.c.l.b16 %v918
      %v1283 = vunpack.c.l.b16 %v919
      %v1284 = vunpack.c.l.b16 %v920
      %v1285 = vunpack.c.l.b16 %v921
      %v1286 = vunpack.c.l.b16 %v922
      %v1287 = vunpack.c.l.b16 %v923
      %v1288 = vunpack.c.l.b16 %v924
      %v1289 = vpack.c.b16 %v1274, %v1273
      %v1290 = vpack.c.b16 %v1276, %v1275
      %v1291 = vpack.c.b16 %v1278, %v1277
      %v1292 = vpack.c.b16 %v1280, %v1279
      %v1293 = vpack.c.b16 %v1282, %v1281
      %v1294 = vpack.c.b16 %v1284, %v1283
      %v1295 = vpack.c.b16 %v1286, %v1285
      %v1296 = vpack.c.b16 %v1288, %v1287
      %1305 = vmatprep.subr.bf16.mxu0 0
      %1306 = vmatpush1.bf16.msra.mxu0 %v1289
      %1307 = vmatprep.subr.bf16.mxu0 0
      %1308 = vmatpush1.bf16.msra.mxu0 %v1290
      %1309 = vmatprep.subr.bf16.mxu0 0
      %1310 = vmatpush1.bf16.msra.mxu0 %v1291
      %1311 = vmatprep.subr.bf16.mxu0 0
      %1312 = vmatpush1.bf16.msra.mxu0 %v1292
      %1313 = vmatprep.subr.bf16.mxu0 0
      %1314 = vmatpush1.bf16.msra.mxu0 %v1293
      %1315 = vmatprep.subr.bf16.mxu0 0
      %1316 = vmatpush1.bf16.msra.mxu0 %v1294
      %1317 = vmatprep.subr.bf16.mxu0 0
      %1318 = vmatpush1.bf16.msra.mxu0 %v1295
      %1319 = vmatprep.subr.bf16.mxu0 0
      %1320 = vmatpush1.bf16.msra.mxu0 %v1296
      %1321 = vmatprep.subr.bf16.mxu0 0
      %1322 = vmatpush1.bf16.msra.mxu0 0
      %1323 = vmatprep.subr.bf16.mxu0 0
      %1324 = vmatpush1.bf16.msra.mxu0 0
      %1325 = vmatprep.subr.bf16.mxu0 0
      %1326 = vmatpush1.bf16.msra.mxu0 0
      %1327 = vmatprep.subr.bf16.mxu0 0
      %1328 = vmatpush1.bf16.msra.mxu0 0
      %1329 = vmatprep.subr.bf16.mxu0 0
      %1330 = vmatpush1.bf16.msra.mxu0 0
      %1331 = vmatprep.subr.bf16.mxu0 0
      %1332 = vmatpush1.bf16.msra.mxu0 0
      %1333 = vmatprep.subr.bf16.mxu0 0
      %1334 = vmatpush1.bf16.msra.mxu0 0
      %1335 = vmatprep.subr.bf16.mxu0 0
      %1336 = vmatpush1.bf16.msra.mxu0 0
      %1337 = vmatprep.mubr.bf16.mxu0 0
      %1338 = vmatmul.mubr.bf16.gmra.mrb[0].mxu0 %v903
      %v1339 = vpop.f32.mrb[0].mxu0
      %v1340 = vadd.f32 %v1231, %v1339
      %v1341 = vpop.f32.mrb[0].mxu0
      %v1342 = vpop.f32.mrb[0].mxu0
      %v1343 = vadd.f32 %v1233, %v1342
      %v1344 = vpop.f32.mrb[0].mxu0
      %1345 = vmatprep.mubr.bf16.mxu0 0
      %1346 = vmatmul.mubr.bf16.gmra.mrb[0].mxu0 %v904
      %v1347 = vpop.f32.mrb[0].mxu0
      %v1348 = vpop.f32.mrb[0].mxu0
      %v1349 = vpop.f32.mrb[0].mxu0
      %v1350 = vadd.f32 %v1236, %v1349
      %v1351 = vpop.f32.mrb[0].mxu0
      %1352 = vmatprep.mubr.bf16.mxu0 0
      %1353 = vmatmul.mubr.bf16.gmra.mrb[0].mxu0 %v905
      %v1354 = vpop.f32.mrb[0].mxu0
      %v1355 = vadd.f32 %v1238, %v1354
      %v1356 = vpop.f32.mrb[0].mxu0
      %v1357 = vpop.f32.mrb[0].mxu0
      %v1358 = vpop.f32.mrb[0].mxu0
      %1359 = vmatprep.mubr.bf16.mxu0 0
      %1360 = vmatmul.mubr.bf16.gmra.mrb[0].mxu0 %v906
      %v1361 = vpop.f32.mrb[0].mxu0
      %v1362 = vadd.f32 %v1241, %v1361
      %v1363 = vpop.f32.mrb[0].mxu0
      %v1364 = vpop.f32.mrb[0].mxu0
      %v1365 = vadd.f32 %v1243, %v1364
      %v1366 = vpop.f32.mrb[0].mxu0
      %1367 = vmatprep.mubr.bf16.mxu0 0
      %1368 = vmatmul.mubr.bf16.gmra.mrb[0].mxu0 %v907
      %v1369 = vpop.f32.mrb[0].mxu0
      %v1370 = vpop.f32.mrb[0].mxu0
      %v1371 = vpop.f32.mrb[0].mxu0
      %v1372 = vadd.f32 %v1246, %v1371
      %v1373 = vpop.f32.mrb[0].mxu0
      %1374 = vmatprep.mubr.bf16.mxu0 0
      %1375 = vmatmul.mubr.bf16.gmra.mrb[0].mxu0 %v908
      %v1376 = vpop.f32.mrb[0].mxu0
      %v1377 = vadd.f32 %v1248, %v1376
      %v1378 = vpop.f32.mrb[0].mxu0
      %v1379 = vpop.f32.mrb[0].mxu0
      %v1380 = vpop.f32.mrb[0].mxu0
      %1381 = vdwg.mxu0
      %vm1394 = vcmask 1045504
      %v1395 = vrot.slane %v1171, 2
      %v1396 = vrot.slane %v1174, 2
      %v1397 = vsel %vm1394, %v1395, %v1396
      %v1398 = vrot.slane %v1179, 2
      %v1399 = vsel %vm1394, %v1396, %v1398
      %v1400 = vrot.slane %v1182, 2
      %v1401 = vrot.slane %v1187, 2
      %v1402 = vsel %vm1394, %v1400, %v1401
      %v1403 = vrot.slane %v1190, 2
      %v1404 = vsel %vm1394, %v1401, %v1403
      %v1405 = vrot.slane %v1195, 2
      %v1406 = vrot.slane %v1198, 2
      %v1407 = vsel %vm1394, %v1405, %v1406
      %v1408 = vrot.slane %v1203, 2
      %v1409 = vsel %vm1394, %v1406, %v1408
      %v1410 = vrot.slane %v1206, 2
      %v1411 = vrot.slane %v1211, 2
      %v1412 = vsel %vm1394, %v1410, %v1411
      %v1413 = vrot.slane %v1214, 2
      %v1414 = vsel %vm1394, %v1411, %v1413
      %v1423 = vadd.f32 %v1340, %v1397
      %v1424 = vadd.f32 %v1343, %v1399
      %v1425 = vadd.f32 %v1350, %v1402
      %v1426 = vadd.f32 %v1355, %v1404
      %v1427 = vadd.f32 %v1362, %v1407
      %v1428 = vadd.f32 %v1365, %v1409
      %v1429 = vadd.f32 %v1372, %v1412
      %v1430 = vadd.f32 %v1377, %v1414
      %v1431 = vld [vmem:[%s5] sm:$0x1]
      %v1432 = vlaneseq
      %v1433 = vshrl.u32 %v1432, 7
      %v1434 = vsub.s32 0, %v1433
      %v1435 = vrot.slane %v1431, %v1434
      %v1436 = vadd.f32 %v1423, %v1435
      %v1437 = vadd.f32 %v1424, %v1435
      %v1438 = vadd.f32 %v1425, %v1435
      %v1439 = vadd.f32 %v1426, %v1435
      %v1440 = vadd.f32 %v1427, %v1435
      %v1441 = vadd.f32 %v1428, %v1435
      %v1442 = vadd.f32 %v1429, %v1435
      %v1443 = vadd.f32 %v1430, %v1435
      %v1444 = vmax.f32 %v1436, 0.0
      %v1445 = vmax.f32 %v1437, 0.0
      %v1446 = vmax.f32 %v1438, 0.0
      %v1447 = vmax.f32 %v1439, 0.0
      %v1448 = vmax.f32 %v1440, 0.0
      %v1449 = vmax.f32 %v1441, 0.0
      %v1450 = vmax.f32 %v1442, 0.0
      %v1451 = vmax.f32 %v1443, 0.0
      %v1452 = vld [vmem:[%s5 + $0x1] sm:$0x1]
      %v1453 = vlaneseq
      %v1454 = vshrl.u32 %v1453, 7
      %v1455 = vsub.s32 0, %v1454
      %v1456 = vrot.slane %v1452, %v1455
      %v1457 = vmul.f32 %v1444, %v1456
      %v1458 = vmul.f32 %v1445, %v1456
      %v1459 = vmul.f32 %v1446, %v1456
      %v1460 = vmul.f32 %v1447, %v1456
      %v1461 = vmul.f32 %v1448, %v1456
      %v1462 = vmul.f32 %v1449, %v1456
      %v1463 = vmul.f32 %v1450, %v1456
      %v1464 = vmul.f32 %v1451, %v1456
      %v1465 = vld [vmem:[%s5 + $0x2] sm:$0x1]
      %v1466 = vlaneseq
      %v1467 = vshrl.u32 %v1466, 7
      %v1468 = vsub.s32 0, %v1467
      %v1469 = vrot.slane %v1465, %v1468
      %v1470 = vadd.f32 %v1457, %v1469
      %v1471 = vadd.f32 %v1458, %v1469
      %v1472 = vadd.f32 %v1459, %v1469
      %v1473 = vadd.f32 %v1460, %v1469
      %v1474 = vadd.f32 %v1461, %v1469
      %v1475 = vadd.f32 %v1462, %v1469
      %v1476 = vadd.f32 %v1463, %v1469
      %v1477 = vadd.f32 %v1464, %v1469
      %1478 = vst [vmem:[%s253] sm:$0xff] %v1470
      %1479 = vst [vmem:[%s253 + $0x8] sm:$0xff] %v1471
      %1480 = vst [vmem:[%s253 + $0x10] sm:$0xff] %v1472
      %1481 = vst [vmem:[%s253 + $0x18] sm:$0xff] %v1473
      %1482 = vst [vmem:[%s253 + $0x20] sm:$0xff] %v1474
      %1483 = vst [vmem:[%s253 + $0x28] sm:$0xff] %v1475
      %1484 = vst [vmem:[%s253 + $0x30] sm:$0xff] %v1476
      %1485 = vst [vmem:[%s253 + $0x38] sm:$0xff] %v1477
      %s1486 = smul.u32 8, %s17
      %p1487 = scmp.lt.s32.totalorder %s1486, 15
      %s1488 = scalar_select %p1487, %s1486, 15
      %s1489 = smul.addr %s1488, 8
      %s1490 = scalar_lea.vmem %s6, %s1489
      // Predicated region
      $region45: #{unet_conv_block.1} parent=43 // pred_check
        %p1491 = pneg %p166
      $region46: #{unet_conv_block.1} parent=43 // pred_check_branch
        %1493 = sbr.rel (%p1491) target = $region48
      $region47: #{unet_conv_block.1} parent=43 // pred_region
        %s1494 = smul.u32 8, %s17
      $region48: #{unet_conv_block.1} parent=43 // pred_fallthru
        _
    $region44: #{unet_conv_block.1} parent=5 // pred_fallthru
      _
    %p1495 = scmp.le.s32.totalorder 2, %s12
    // Predicated region
    $region49: #{unet_conv_block.1} parent=5 // pred_check
      %p1496 = pneg %p1495
    $region50: #{unet_conv_block.1} parent=5 // pred_check_branch
      %1498 = sbr.rel (%p1496) target = $region52
    $region51: #{unet_conv_block.1} parent=5 // pred_region
      %s1499 = ssub.s32 %s12, 2
      // Predicated region
      $region53: #{unet_conv_block.1} parent=51 // pred_check
        %p1500 = pneg %p172
      $region54: #{unet_conv_block.1} parent=51 // pred_check_branch
        %1502 = sbr.rel (%p1500) target = $region56
      $region55: #{unet_conv_block.1} parent=51 // pred_region
        %s1503 = smul.u32 8, %s18
        %p1504 = scmp.lt.s32.totalorder %s1503, 15
        %s1505 = scalar_select %p1504, %s1503, 15
        %s1506 = smul.addr %s1505, 8
        %s1507 = scalar_lea.vmem %s6, %s1506
      $region56: #{unet_conv_block.1} parent=51 // pred_fallthru
        _
    $region52: #{unet_conv_block.1} parent=5 // pred_fallthru
      _
  $region6: #{unet_conv_block.1} parent=0 // loop_footer
    %s16 = sadd.s32 1, %s12
  $region7: #{unet_conv_block.1} parent=0 // loop_footer_branch
    %11 = sbr.rel target = $region3
  $region8: #{unet_conv_block.1} parent=0 // loop_exit
    _

</llo_original>
